<compile_context>
chip_gen: v7x
topology: tpu7x:2x2x1
jax: 0.10.0
libtpu: 0.0.40
codegen_flags: <defaults>
</compile_context>

<pallas_src>
import functools

import jax
import jax.numpy as jnp
from jax.experimental import pallas as pl
from jax.experimental.pallas import tpu as pltpu

_MATMUL_DTYPE = jnp.bfloat16   # MXU input dtype; accumulation stays f32


def _round_up(v, m):
    return (v + m - 1) // m * m


# ------------------------------ fused kernel --------------------------------

def _corex_kernel(*refs, num_layers, dilations, K, T_in, T_final, bn_scale):
    """Whole CoRex forward for one tile of M = B*N spatial positions.

    In-kernel activation layout is a 2-D slab (C, T*BM) with lane index
    t*BM + m (time-major).  Every conv is one channel-contraction matmul on the
    MXU; temporal shifts are static contiguous lane slices.
    """
    x_ref = refs[0]
    out_ref = refs[-1]
    w = refs[1:-1]
    start_w, start_b = w[0], w[1]
    layer_w = w[2:2 + 4 * num_layers]
    end1_w, end1_b, end2_w, end2_b = w[2 + 4 * num_layers:]

    BM = x_ref.shape[-1]

    def matmul(w_ref, x2d, b_ref):
        return (jnp.dot(w_ref[...], x2d.astype(_MATMUL_DTYPE),
                        preferred_element_type=jnp.float32) + b_ref[...])

    # ---- start 1x1 conv: (Cin, T_in*BM) -> (rc, T_in*BM)
    # x_ref is already bf16 (pre-cast in the wrapper) -> half the DMA bytes.
    xs = jnp.concatenate([x_ref[:, t, :] for t in range(T_in)], axis=-1)
    h = matmul(start_w, xs, start_b)

    sc = end1_w.shape[1]                      # skip channels
    skip = None
    t_cur = T_in

    for l in range(num_layers):
        wfg = layer_w[4 * l]                  # (2*dc, K*rc)  [Wf; Wg]
        bfg = layer_w[4 * l + 1]
        wsr = layer_w[4 * l + 2]              # (sc+rc, dc)   [skip_w; res_w]
        bsr = layer_w[4 * l + 3]
        d = dilations[l]
        t_out = t_cur - (K - 1) * d

        residual = h
        # dilated taps = contiguous lane slices, stacked along the channel axis
        # so the stacked [Wf;Wg] weight needs a single MXU push.
        taps = [h[:, (k * d) * BM:(k * d + t_out) * BM] for k in range(K)]
        xt = jnp.concatenate(taps, axis=0)            # (K*rc, t_out*BM)
        fg = matmul(wfg, xt, bfg)                     # (2*dc, t_out*BM)
        dc = fg.shape[0] // 2
        gated = jnp.tanh(fg[:dc]) * jax.nn.sigmoid(fg[dc:])

        # skip conv + residual conv share the gated input -> one stacked matmul
        srk = matmul(wsr, gated, bsr)                 # (sc+rc, t_out*BM)
        s_contrib = srk[:sc, (t_out - T_final) * BM:]
        skip = s_contrib if skip is None else skip + s_contrib
        # residual add, then eval-mode BatchNorm (running stats 0/1, affine id.)
        h = (srk[sc:] + residual[:, (t_cur - t_out) * BM:]) * bn_scale
        t_cur = t_out

    z = jnp.maximum(skip, 0.0)
    z = jnp.maximum(matmul(end1_w, z, end1_b), 0.0)
    y = matmul(end2_w, z, end2_b)                     # (out_dim, T_final*BM)

    for t in range(T_final):
        out_ref[:, t, :] = y[:, t * BM:(t + 1) * BM]


# --------------------------- Block / CoRex forward ---------------------------

def block_forward(params, x, cfg):
    """Block.forward(x) == CoRex(x).  x: (B, in_dim, num_nodes, T) float32."""
    B, Cin, N, T = x.shape
    K = cfg["kernel_size"]
    dils = tuple(cfg["dilations"])
    rf = cfg["receptive_field"]
    out_dim = cfg["out_dim"]

    # F.pad(input, (rf - T, 0, 0, 0)) : left-pad the time axis
    if T < rf:
        x = jnp.pad(x, ((0, 0), (0, 0), (0, 0), (rf - T, 0)))
        T = rf
    T_final = T
    for d in dils:
        T_final -= (K - 1) * d

    # single layout change: NCHW -> (C, T, B*N) slab (undone once at the end)
    M0 = B * N
    xs = jnp.transpose(x, (1, 3, 0, 2)).reshape(Cin, T, M0)
    xs = xs.astype(_MATMUL_DTYPE)             # matmul input dtype; halves DMA

    BM = _round_up(M0, 8) if M0 <= 256 else 256       # BM%128==0 when tiling
    M_pad = _round_up(M0, BM)
    if M_pad != M0:
        xs = jnp.pad(xs, ((0, 0), (0, 0), (0, M_pad - M0)))

    # ---- repack / stack the (tiny) weights
    def b2(v):
        return v.reshape(-1, 1).astype(jnp.float32)

    rc = params["start_w"].shape[0]
    ops = [params["start_w"].astype(_MATMUL_DTYPE), b2(params["start_b"])]
    for lp in params["layers"]:
        dc = lp["wf"].shape[0]
        # PyTorch (Cout, Cin, 1, K) -> (Cout, K*Cin), tap-major (matches taps)
        wf2 = jnp.transpose(lp["wf"][:, :, 0, :], (0, 2, 1)).reshape(dc, K * rc)
        wg2 = jnp.transpose(lp["wg"][:, :, 0, :], (0, 2, 1)).reshape(dc, K * rc)
        wfg = jnp.concatenate([wf2, wg2], axis=0).astype(_MATMUL_DTYPE)
        bfg = b2(jnp.concatenate([lp["bf"], lp["bg"]]))
        wsr = jnp.concatenate([lp["skip_w"], lp["res_w"]],
                              axis=0).astype(_MATMUL_DTYPE)
        bsr = b2(jnp.concatenate([lp["skip_b"], lp["res_b"]]))
        ops += [wfg, bfg, wsr, bsr]
    ops += [params["end1_w"].astype(_MATMUL_DTYPE), b2(params["end1_b"]),
            params["end2_w"].astype(_MATMUL_DTYPE), b2(params["end2_b"])]

    num_layers = len(params["layers"])
    bn_scale = 1.0 / (1.0 + 1e-5) ** 0.5    # eval BatchNorm2d, default stats

    kernel = functools.partial(
        _corex_kernel, num_layers=num_layers, dilations=dils, K=K,
        T_in=T, T_final=T_final, bn_scale=bn_scale)

    in_specs = [pl.BlockSpec((Cin, T, BM), lambda i: (0, 0, i))]
    in_specs += [pl.BlockSpec(o.shape, lambda i: (0, 0)) for o in ops]
    out_spec = pl.BlockSpec((out_dim, T_final, BM), lambda i: (0, 0, i))

    y = pl.pallas_call(
        kernel,
        out_shape=jax.ShapeDtypeStruct((out_dim, T_final, M_pad), jnp.float32),
        grid=(M_pad // BM,),
        in_specs=in_specs,
        out_specs=out_spec,
        compiler_params=pltpu.CompilerParams(
            dimension_semantics=("parallel",)),
    )(xs, *ops)

    y = y[:, :, :M0].reshape(out_dim, T_final, B, N)
    return jnp.transpose(y, (2, 0, 3, 1))             # (B, out_dim, N, T_final)


# -------------------------- pure-JAX f32 reference ---------------------------

def _reference_forward(params, x, cfg):
    K = cfg["kernel_size"]
    rf = cfg["receptive_field"]
    if x.shape[-1] < rf:
        x = jnp.pad(x, ((0, 0), (0, 0), (0, 0), (rf - x.shape[-1], 0)))

    def c1x1(h, w, b):
        return jnp.einsum('oc,bcnt->bont', w, h) + b[None, :, None, None]

    def dconv(h, w, b, d):
        t_out = h.shape[-1] - (K - 1) * d
        out = b[None, :, None, None]
        for k in range(K):
            out = out + jnp.einsum('oc,bcnt->bont', w[:, :, 0, k],
                                   h[:, :, :, k * d:k * d + t_out])
        return out

    bn_scale = 1.0 / (1.0 + 1e-5) ** 0.5
    h = c1x1(x, params["start_w"], params["start_b"])
    skip = None
    for lp, d in zip(params["layers"], cfg["dilations"]):
        residual = h
        f = jnp.tanh(dconv(residual, lp["wf"], lp["bf"], d))
        g = jax.nn.sigmoid(dconv(residual, lp["wg"], lp["bg"], d))
        h = f * g
        s = c1x1(h, lp["skip_w"], lp["skip_b"])
        skip = s if skip is None else s + skip[:, :, :, -s.shape[-1]:]
        h = c1x1(h, lp["res_w"], lp["res_b"])
        h = (h + residual[:, :, :, -h.shape[-1]:]) * bn_scale
    z = jnp.maximum(skip, 0.0)
    z = jnp.maximum(c1x1(z, params["end1_w"], params["end1_b"]), 0.0)
    return c1x1(z, params["end2_w"], params["end2_b"])


# ------------------------------- model config --------------------------------

def make_config(num_nodes=4, in_dim=2, seq_length=8, nhid=8,
                kernel_size=2, blocks=2, layers=2):
    dilations = []
    receptive_field = 1
    for _ in range(blocks):
        additional_scope = kernel_size - 1
        d = 1
        for _ in range(layers):
            dilations.append(d)
            d *= 2
            receptive_field += additional_scope
            additional_scope *= 2
    return dict(
        num_nodes=num_nodes, in_dim=in_dim, out_dim=seq_length,
        residual_channels=nhid, dilation_channels=nhid,
        skip_channels=nhid * 8, end_channels=nhid * 16,
        kernel_size=kernel_size, dilations=dilations,
        receptive_field=receptive_field,
    )


def init_params(key, cfg):
    n_layers = len(cfg["dilations"])
    keys = iter(jax.random.split(key, 6 + 8 * n_layers))

    def nrm(shape):
        return 0.1 * jax.random.normal(next(keys), shape, jnp.float32)

    rc, dc = cfg["residual_channels"], cfg["dilation_channels"]
    sc, ec = cfg["skip_channels"], cfg["end_channels"]
    K = cfg["kernel_size"]
    params = dict(
        start_w=nrm((rc, cfg["in_dim"])), start_b=nrm((rc,)),
        end1_w=nrm((ec, sc)), end1_b=nrm((ec,)),
        end2_w=nrm((cfg["out_dim"], ec)), end2_b=nrm((cfg["out_dim"],)),
        layers=[],
    )
    for _ in range(n_layers):                  # NOTE: dilations stay static (cfg)
        params["layers"].append(dict(
            wf=nrm((dc, rc, 1, K)), bf=nrm((dc,)),
            wg=nrm((dc, rc, 1, K)), bg=nrm((dc,)),
            skip_w=nrm((sc, dc)), skip_b=nrm((sc,)),
            res_w=nrm((rc, dc)), res_b=nrm((rc,)),
        ))
    return params


# ------------------------------------ main ------------------------------------

if __name__ == "__main__":
    key = jax.random.PRNGKey(0)
    k_param, k_x = jax.random.split(key)

    cfg = make_config(num_nodes=4, in_dim=2, seq_length=8, nhid=8,
                      kernel_size=2, blocks=2, layers=2)
    params = init_params(k_param, cfg)

    B, T_in = 2, 8
    x = jax.random.normal(k_x, (B, cfg["in_dim"], cfg["num_nodes"], T_in),
                          jnp.float32)

    fwd = jax.jit(functools.partial(block_forward, cfg=cfg))
    out = jax.block_until_ready(fwd(params, x))

    # T after the 4 dilated layers (d = 1,2,1,2): 8 -> 7 -> 5 -> 4 -> 2
    assert out.shape == (B, cfg["out_dim"], cfg["num_nodes"], 2), out.shape
    assert bool(jnp.all(jnp.isfinite(out)))

    ref = _reference_forward(params, x, cfg)
    max_err = float(jnp.max(jnp.abs(out - ref)))
    assert max_err < 5e-2, f"max abs error vs f32 reference: {max_err}"

    print("KERNEL_OK")
</pallas_src>

<mosaic_0001>
module attributes {stable_mosaic.version = 11 : i64} {
  func.func @_corex_kernel(%arg0: i32, %arg1: memref<2x8x8xbf16, #tpu.memory_space<vmem>>, %arg2: memref<8x2xbf16, #tpu.memory_space<vmem>>, %arg3: memref<8x1xf32, #tpu.memory_space<vmem>>, %arg4: memref<16x16xbf16, #tpu.memory_space<vmem>>, %arg5: memref<16x1xf32, #tpu.memory_space<vmem>>, %arg6: memref<72x8xbf16, #tpu.memory_space<vmem>>, %arg7: memref<72x1xf32, #tpu.memory_space<vmem>>, %arg8: memref<16x16xbf16, #tpu.memory_space<vmem>>, %arg9: memref<16x1xf32, #tpu.memory_space<vmem>>, %arg10: memref<72x8xbf16, #tpu.memory_space<vmem>>, %arg11: memref<72x1xf32, #tpu.memory_space<vmem>>, %arg12: memref<16x16xbf16, #tpu.memory_space<vmem>>, %arg13: memref<16x1xf32, #tpu.memory_space<vmem>>, %arg14: memref<72x8xbf16, #tpu.memory_space<vmem>>, %arg15: memref<72x1xf32, #tpu.memory_space<vmem>>, %arg16: memref<16x16xbf16, #tpu.memory_space<vmem>>, %arg17: memref<16x1xf32, #tpu.memory_space<vmem>>, %arg18: memref<72x8xbf16, #tpu.memory_space<vmem>>, %arg19: memref<72x1xf32, #tpu.memory_space<vmem>>, %arg20: memref<128x64xbf16, #tpu.memory_space<vmem>>, %arg21: memref<128x1xf32, #tpu.memory_space<vmem>>, %arg22: memref<8x128xbf16, #tpu.memory_space<vmem>>, %arg23: memref<8x1xf32, #tpu.memory_space<vmem>>, %arg24: memref<8x2x8xf32, #tpu.memory_space<vmem>>) attributes {dimension_semantics = [#tpu.dimension_semantics<parallel>], iteration_bounds = array<i64: 1>, scalar_prefetch = 0 : i64, scratch_operands = 0 : i64, tpu.core_type = #tpu.core_type<tc>, window_params = [{transform_indices = @transform_0, window_bounds = array<i64: 2, 8, 8>}, {pipeline_mode = #tpu.pipeline_mode<synchronous>, transform_indices = @transform_1, window_bounds = array<i64: 8, 2>}, {pipeline_mode = #tpu.pipeline_mode<synchronous>, transform_indices = @transform_2, window_bounds = array<i64: 8, 1>}, {pipeline_mode = #tpu.pipeline_mode<synchronous>, transform_indices = @transform_3, window_bounds = array<i64: 16, 16>}, {pipeline_mode = #tpu.pipeline_mode<synchronous>, transform_indices = @transform_4, window_bounds = array<i64: 16, 1>}, {pipeline_mode = #tpu.pipeline_mode<synchronous>, transform_indices = @transform_5, window_bounds = array<i64: 72, 8>}, {pipeline_mode = #tpu.pipeline_mode<synchronous>, transform_indices = @transform_6, window_bounds = array<i64: 72, 1>}, {pipeline_mode = #tpu.pipeline_mode<synchronous>, transform_indices = @transform_7, window_bounds = array<i64: 16, 16>}, {pipeline_mode = #tpu.pipeline_mode<synchronous>, transform_indices = @transform_8, window_bounds = array<i64: 16, 1>}, {pipeline_mode = #tpu.pipeline_mode<synchronous>, transform_indices = @transform_9, window_bounds = array<i64: 72, 8>}, {pipeline_mode = #tpu.pipeline_mode<synchronous>, transform_indices = @transform_10, window_bounds = array<i64: 72, 1>}, {pipeline_mode = #tpu.pipeline_mode<synchronous>, transform_indices = @transform_11, window_bounds = array<i64: 16, 16>}, {pipeline_mode = #tpu.pipeline_mode<synchronous>, transform_indices = @transform_12, window_bounds = array<i64: 16, 1>}, {pipeline_mode = #tpu.pipeline_mode<synchronous>, transform_indices = @transform_13, window_bounds = array<i64: 72, 8>}, {pipeline_mode = #tpu.pipeline_mode<synchronous>, transform_indices = @transform_14, window_bounds = array<i64: 72, 1>}, {pipeline_mode = #tpu.pipeline_mode<synchronous>, transform_indices = @transform_15, window_bounds = array<i64: 16, 16>}, {pipeline_mode = #tpu.pipeline_mode<synchronous>, transform_indices = @transform_16, window_bounds = array<i64: 16, 1>}, {pipeline_mode = #tpu.pipeline_mode<synchronous>, transform_indices = @transform_17, window_bounds = array<i64: 72, 8>}, {pipeline_mode = #tpu.pipeline_mode<synchronous>, transform_indices = @transform_18, window_bounds = array<i64: 72, 1>}, {pipeline_mode = #tpu.pipeline_mode<synchronous>, transform_indices = @transform_19, window_bounds = array<i64: 128, 64>}, {pipeline_mode = #tpu.pipeline_mode<synchronous>, transform_indices = @transform_20, window_bounds = array<i64: 128, 1>}, {pipeline_mode = #tpu.pipeline_mode<synchronous>, transform_indices = @transform_21, window_bounds = array<i64: 8, 128>}, {pipeline_mode = #tpu.pipeline_mode<synchronous>, transform_indices = @transform_22, window_bounds = array<i64: 8, 1>}, {transform_indices = @transform_23, window_bounds = array<i64: 8, 2, 8>}]} {
    %c0 = arith.constant 0 : index
    %c0_0 = arith.constant 0 : index
    %c0_1 = arith.constant 0 : index
    %0 = vector.load %arg1[%c0, %c0_0, %c0_1] : memref<2x8x8xbf16, #tpu.memory_space<vmem>>, vector<2x1x8xbf16>
    %1 = vector.shape_cast %0 : vector<2x1x8xbf16> to vector<2x8xbf16>
    %c0_2 = arith.constant 0 : index
    %c1 = arith.constant 1 : index
    %c0_3 = arith.constant 0 : index
    %2 = vector.load %arg1[%c0_2, %c1, %c0_3] : memref<2x8x8xbf16, #tpu.memory_space<vmem>>, vector<2x1x8xbf16>
    %3 = vector.shape_cast %2 : vector<2x1x8xbf16> to vector<2x8xbf16>
    %c0_4 = arith.constant 0 : index
    %c2 = arith.constant 2 : index
    %c0_5 = arith.constant 0 : index
    %4 = vector.load %arg1[%c0_4, %c2, %c0_5] : memref<2x8x8xbf16, #tpu.memory_space<vmem>>, vector<2x1x8xbf16>
    %5 = vector.shape_cast %4 : vector<2x1x8xbf16> to vector<2x8xbf16>
    %c0_6 = arith.constant 0 : index
    %c3 = arith.constant 3 : index
    %c0_7 = arith.constant 0 : index
    %6 = vector.load %arg1[%c0_6, %c3, %c0_7] : memref<2x8x8xbf16, #tpu.memory_space<vmem>>, vector<2x1x8xbf16>
    %7 = vector.shape_cast %6 : vector<2x1x8xbf16> to vector<2x8xbf16>
    %c0_8 = arith.constant 0 : index
    %c4 = arith.constant 4 : index
    %c0_9 = arith.constant 0 : index
    %8 = vector.load %arg1[%c0_8, %c4, %c0_9] : memref<2x8x8xbf16, #tpu.memory_space<vmem>>, vector<2x1x8xbf16>
    %9 = vector.shape_cast %8 : vector<2x1x8xbf16> to vector<2x8xbf16>
    %c0_10 = arith.constant 0 : index
    %c5 = arith.constant 5 : index
    %c0_11 = arith.constant 0 : index
    %10 = vector.load %arg1[%c0_10, %c5, %c0_11] : memref<2x8x8xbf16, #tpu.memory_space<vmem>>, vector<2x1x8xbf16>
    %11 = vector.shape_cast %10 : vector<2x1x8xbf16> to vector<2x8xbf16>
    %c0_12 = arith.constant 0 : index
    %c6 = arith.constant 6 : index
    %c0_13 = arith.constant 0 : index
    %12 = vector.load %arg1[%c0_12, %c6, %c0_13] : memref<2x8x8xbf16, #tpu.memory_space<vmem>>, vector<2x1x8xbf16>
    %13 = vector.shape_cast %12 : vector<2x1x8xbf16> to vector<2x8xbf16>
    %c0_14 = arith.constant 0 : index
    %c7 = arith.constant 7 : index
    %c0_15 = arith.constant 0 : index
    %14 = vector.load %arg1[%c0_14, %c7, %c0_15] : memref<2x8x8xbf16, #tpu.memory_space<vmem>>, vector<2x1x8xbf16>
    %15 = vector.shape_cast %14 : vector<2x1x8xbf16> to vector<2x8xbf16>
    %16 = tpu.concatenate %1, %3, %5, %7, %9, %11, %13, %15 in 1 : vector<2x8xbf16>, vector<2x8xbf16>, vector<2x8xbf16>, vector<2x8xbf16>, vector<2x8xbf16>, vector<2x8xbf16>, vector<2x8xbf16>, vector<2x8xbf16> -> vector<2x64xbf16>
    %c0_16 = arith.constant 0 : index
    %c0_17 = arith.constant 0 : index
    %17 = vector.load %arg2[%c0_16, %c0_17] : memref<8x2xbf16, #tpu.memory_space<vmem>>, vector<8x2xbf16>
    %cst = arith.constant dense<0.000000e+00> : vector<8x64xf32>
    %18 = tpu.matmul %17, %16, %cst {dimension_numbers = #tpu.dot_dimension_numbers<[1], [0], [0], [1], [0, 0, 1, 1], [], []>} : vector<8x2xbf16>, vector<2x64xbf16>, vector<8x64xf32> -> vector<8x64xf32>
    %c0_18 = arith.constant 0 : index
    %c0_19 = arith.constant 0 : index
    %19 = vector.load %arg3[%c0_18, %c0_19] : memref<8x1xf32, #tpu.memory_space<vmem>>, vector<8x1xf32>
    %20 = vector.broadcast %19 : vector<8x1xf32> to vector<8x64xf32>
    %21 = arith.addf %18, %20 : vector<8x64xf32>
    %22 = vector.extract_strided_slice %21 {offsets = [0, 0], sizes = [8, 56], strides = [1, 1]} : vector<8x64xf32> to vector<8x56xf32>
    %23 = vector.extract_strided_slice %21 {offsets = [0, 8], sizes = [8, 56], strides = [1, 1]} : vector<8x64xf32> to vector<8x56xf32>
    %24 = tpu.concatenate %22, %23 in 0 : vector<8x56xf32>, vector<8x56xf32> -> vector<16x56xf32>
    %c0_20 = arith.constant 0 : index
    %c0_21 = arith.constant 0 : index
    %25 = vector.load %arg4[%c0_20, %c0_21] : memref<16x16xbf16, #tpu.memory_space<vmem>>, vector<16x16xbf16>
    %26 = arith.truncf %24 : vector<16x56xf32> to vector<16x56xbf16>
    %cst_22 = arith.constant dense<0.000000e+00> : vector<16x56xf32>
    %27 = tpu.matmul %25, %26, %cst_22 {dimension_numbers = #tpu.dot_dimension_numbers<[1], [0], [0], [1], [0, 0, 1, 1], [], []>} : vector<16x16xbf16>, vector<16x56xbf16>, vector<16x56xf32> -> vector<16x56xf32>
    %c0_23 = arith.constant 0 : index
    %c0_24 = arith.constant 0 : index
    %28 = vector.load %arg5[%c0_23, %c0_24] : memref<16x1xf32, #tpu.memory_space<vmem>>, vector<16x1xf32>
    %29 = vector.broadcast %28 : vector<16x1xf32> to vector<16x56xf32>
    %30 = arith.addf %27, %29 : vector<16x56xf32>
    %31 = vector.extract_strided_slice %30 {offsets = [0, 0], sizes = [8, 56], strides = [1, 1]} : vector<16x56xf32> to vector<8x56xf32>
    %32 = math.tanh %31 : vector<8x56xf32>
    %33 = vector.extract_strided_slice %30 {offsets = [8, 0], sizes = [8, 56], strides = [1, 1]} : vector<16x56xf32> to vector<8x56xf32>
    %34 = arith.negf %33 : vector<8x56xf32>
    %35 = math.exp %34 : vector<8x56xf32>
    %cst_25 = arith.constant 1.000000e+00 : f32
    %36 = vector.broadcast %cst_25 : f32 to vector<8x56xf32>
    %37 = arith.addf %36, %35 : vector<8x56xf32>
    %38 = arith.divf %36, %37 : vector<8x56xf32>
    %39 = arith.mulf %32, %38 : vector<8x56xf32>
    %c0_26 = arith.constant 0 : index
    %c0_27 = arith.constant 0 : index
    %40 = vector.load %arg6[%c0_26, %c0_27] : memref<72x8xbf16, #tpu.memory_space<vmem>>, vector<72x8xbf16>
    %41 = arith.truncf %39 : vector<8x56xf32> to vector<8x56xbf16>
    %cst_28 = arith.constant dense<0.000000e+00> : vector<72x56xf32>
    %42 = tpu.matmul %40, %41, %cst_28 {dimension_numbers = #tpu.dot_dimension_numbers<[1], [0], [0], [1], [0, 0, 1, 1], [], []>} : vector<72x8xbf16>, vector<8x56xbf16>, vector<72x56xf32> -> vector<72x56xf32>
    %c0_29 = arith.constant 0 : index
    %c0_30 = arith.constant 0 : index
    %43 = vector.load %arg7[%c0_29, %c0_30] : memref<72x1xf32, #tpu.memory_space<vmem>>, vector<72x1xf32>
    %44 = vector.broadcast %43 : vector<72x1xf32> to vector<72x56xf32>
    %45 = arith.addf %42, %44 : vector<72x56xf32>
    %46 = vector.extract_strided_slice %45 {offsets = [0, 40], sizes = [64, 16], strides = [1, 1]} : vector<72x56xf32> to vector<64x16xf32>
    %47 = vector.extract_strided_slice %45 {offsets = [64, 0], sizes = [8, 56], strides = [1, 1]} : vector<72x56xf32> to vector<8x56xf32>
    %48 = vector.extract_strided_slice %21 {offsets = [0, 8], sizes = [8, 56], strides = [1, 1]} : vector<8x64xf32> to vector<8x56xf32>
    %49 = arith.addf %47, %48 : vector<8x56xf32>
    %cst_31 = arith.constant 0.999994993 : f32
    %50 = vector.broadcast %cst_31 : f32 to vector<8x56xf32>
    %51 = arith.mulf %49, %50 : vector<8x56xf32>
    %52 = vector.extract_strided_slice %51 {offsets = [0, 0], sizes = [8, 40], strides = [1, 1]} : vector<8x56xf32> to vector<8x40xf32>
    %53 = vector.extract_strided_slice %51 {offsets = [0, 16], sizes = [8, 40], strides = [1, 1]} : vector<8x56xf32> to vector<8x40xf32>
    %54 = tpu.concatenate %52, %53 in 0 : vector<8x40xf32>, vector<8x40xf32> -> vector<16x40xf32>
    %c0_32 = arith.constant 0 : index
    %c0_33 = arith.constant 0 : index
    %55 = vector.load %arg8[%c0_32, %c0_33] : memref<16x16xbf16, #tpu.memory_space<vmem>>, vector<16x16xbf16>
    %56 = arith.truncf %54 : vector<16x40xf32> to vector<16x40xbf16>
    %cst_34 = arith.constant dense<0.000000e+00> : vector<16x40xf32>
    %57 = tpu.matmul %55, %56, %cst_34 {dimension_numbers = #tpu.dot_dimension_numbers<[1], [0], [0], [1], [0, 0, 1, 1], [], []>} : vector<16x16xbf16>, vector<16x40xbf16>, vector<16x40xf32> -> vector<16x40xf32>
    %c0_35 = arith.constant 0 : index
    %c0_36 = arith.constant 0 : index
    %58 = vector.load %arg9[%c0_35, %c0_36] : memref<16x1xf32, #tpu.memory_space<vmem>>, vector<16x1xf32>
    %59 = vector.broadcast %58 : vector<16x1xf32> to vector<16x40xf32>
    %60 = arith.addf %57, %59 : vector<16x40xf32>
    %61 = vector.extract_strided_slice %60 {offsets = [0, 0], sizes = [8, 40], strides = [1, 1]} : vector<16x40xf32> to vector<8x40xf32>
    %62 = math.tanh %61 : vector<8x40xf32>
    %63 = vector.extract_strided_slice %60 {offsets = [8, 0], sizes = [8, 40], strides = [1, 1]} : vector<16x40xf32> to vector<8x40xf32>
    %64 = arith.negf %63 : vector<8x40xf32>
    %65 = math.exp %64 : vector<8x40xf32>
    %cst_37 = arith.constant 1.000000e+00 : f32
    %66 = vector.broadcast %cst_37 : f32 to vector<8x40xf32>
    %67 = arith.addf %66, %65 : vector<8x40xf32>
    %68 = arith.divf %66, %67 : vector<8x40xf32>
    %69 = arith.mulf %62, %68 : vector<8x40xf32>
    %c0_38 = arith.constant 0 : index
    %c0_39 = arith.constant 0 : index
    %70 = vector.load %arg10[%c0_38, %c0_39] : memref<72x8xbf16, #tpu.memory_space<vmem>>, vector<72x8xbf16>
    %71 = arith.truncf %69 : vector<8x40xf32> to vector<8x40xbf16>
    %cst_40 = arith.constant dense<0.000000e+00> : vector<72x40xf32>
    %72 = tpu.matmul %70, %71, %cst_40 {dimension_numbers = #tpu.dot_dimension_numbers<[1], [0], [0], [1], [0, 0, 1, 1], [], []>} : vector<72x8xbf16>, vector<8x40xbf16>, vector<72x40xf32> -> vector<72x40xf32>
    %c0_41 = arith.constant 0 : index
    %c0_42 = arith.constant 0 : index
    %73 = vector.load %arg11[%c0_41, %c0_42] : memref<72x1xf32, #tpu.memory_space<vmem>>, vector<72x1xf32>
    %74 = vector.broadcast %73 : vector<72x1xf32> to vector<72x40xf32>
    %75 = arith.addf %72, %74 : vector<72x40xf32>
    %76 = vector.extract_strided_slice %75 {offsets = [0, 24], sizes = [64, 16], strides = [1, 1]} : vector<72x40xf32> to vector<64x16xf32>
    %77 = arith.addf %46, %76 : vector<64x16xf32>
    %78 = vector.extract_strided_slice %75 {offsets = [64, 0], sizes = [8, 40], strides = [1, 1]} : vector<72x40xf32> to vector<8x40xf32>
    %79 = vector.extract_strided_slice %51 {offsets = [0, 16], sizes = [8, 40], strides = [1, 1]} : vector<8x56xf32> to vector<8x40xf32>
    %80 = arith.addf %78, %79 : vector<8x40xf32>
    %cst_43 = arith.constant 0.999994993 : f32
    %81 = vector.broadcast %cst_43 : f32 to vector<8x40xf32>
    %82 = arith.mulf %80, %81 : vector<8x40xf32>
    %83 = vector.extract_strided_slice %82 {offsets = [0, 0], sizes = [8, 32], strides = [1, 1]} : vector<8x40xf32> to vector<8x32xf32>
    %84 = vector.extract_strided_slice %82 {offsets = [0, 8], sizes = [8, 32], strides = [1, 1]} : vector<8x40xf32> to vector<8x32xf32>
    %85 = tpu.concatenate %83, %84 in 0 : vector<8x32xf32>, vector<8x32xf32> -> vector<16x32xf32>
    %c0_44 = arith.constant 0 : index
    %c0_45 = arith.constant 0 : index
    %86 = vector.load %arg12[%c0_44, %c0_45] : memref<16x16xbf16, #tpu.memory_space<vmem>>, vector<16x16xbf16>
    %87 = arith.truncf %85 : vector<16x32xf32> to vector<16x32xbf16>
    %cst_46 = arith.constant dense<0.000000e+00> : vector<16x32xf32>
    %88 = tpu.matmul %86, %87, %cst_46 {dimension_numbers = #tpu.dot_dimension_numbers<[1], [0], [0], [1], [0, 0, 1, 1], [], []>} : vector<16x16xbf16>, vector<16x32xbf16>, vector<16x32xf32> -> vector<16x32xf32>
    %c0_47 = arith.constant 0 : index
    %c0_48 = arith.constant 0 : index
    %89 = vector.load %arg13[%c0_47, %c0_48] : memref<16x1xf32, #tpu.memory_space<vmem>>, vector<16x1xf32>
    %90 = vector.broadcast %89 : vector<16x1xf32> to vector<16x32xf32>
    %91 = arith.addf %88, %90 : vector<16x32xf32>
    %92 = vector.extract_strided_slice %91 {offsets = [0, 0], sizes = [8, 32], strides = [1, 1]} : vector<16x32xf32> to vector<8x32xf32>
    %93 = math.tanh %92 : vector<8x32xf32>
    %94 = vector.extract_strided_slice %91 {offsets = [8, 0], sizes = [8, 32], strides = [1, 1]} : vector<16x32xf32> to vector<8x32xf32>
    %95 = arith.negf %94 : vector<8x32xf32>
    %96 = math.exp %95 : vector<8x32xf32>
    %cst_49 = arith.constant 1.000000e+00 : f32
    %97 = vector.broadcast %cst_49 : f32 to vector<8x32xf32>
    %98 = arith.addf %97, %96 : vector<8x32xf32>
    %99 = arith.divf %97, %98 : vector<8x32xf32>
    %100 = arith.mulf %93, %99 : vector<8x32xf32>
    %c0_50 = arith.constant 0 : index
    %c0_51 = arith.constant 0 : index
    %101 = vector.load %arg14[%c0_50, %c0_51] : memref<72x8xbf16, #tpu.memory_space<vmem>>, vector<72x8xbf16>
    %102 = arith.truncf %100 : vector<8x32xf32> to vector<8x32xbf16>
    %cst_52 = arith.constant dense<0.000000e+00> : vector<72x32xf32>
    %103 = tpu.matmul %101, %102, %cst_52 {dimension_numbers = #tpu.dot_dimension_numbers<[1], [0], [0], [1], [0, 0, 1, 1], [], []>} : vector<72x8xbf16>, vector<8x32xbf16>, vector<72x32xf32> -> vector<72x32xf32>
    %c0_53 = arith.constant 0 : index
    %c0_54 = arith.constant 0 : index
    %104 = vector.load %arg15[%c0_53, %c0_54] : memref<72x1xf32, #tpu.memory_space<vmem>>, vector<72x1xf32>
    %105 = vector.broadcast %104 : vector<72x1xf32> to vector<72x32xf32>
    %106 = arith.addf %103, %105 : vector<72x32xf32>
    %107 = vector.extract_strided_slice %106 {offsets = [0, 16], sizes = [64, 16], strides = [1, 1]} : vector<72x32xf32> to vector<64x16xf32>
    %108 = arith.addf %77, %107 : vector<64x16xf32>
    %109 = vector.extract_strided_slice %106 {offsets = [64, 0], sizes = [8, 32], strides = [1, 1]} : vector<72x32xf32> to vector<8x32xf32>
    %110 = vector.extract_strided_slice %82 {offsets = [0, 8], sizes = [8, 32], strides = [1, 1]} : vector<8x40xf32> to vector<8x32xf32>
    %111 = arith.addf %109, %110 : vector<8x32xf32>
    %cst_55 = arith.constant 0.999994993 : f32
    %112 = vector.broadcast %cst_55 : f32 to vector<8x32xf32>
    %113 = arith.mulf %111, %112 : vector<8x32xf32>
    %114 = vector.extract_strided_slice %113 {offsets = [0, 0], sizes = [8, 16], strides = [1, 1]} : vector<8x32xf32> to vector<8x16xf32>
    %115 = vector.extract_strided_slice %113 {offsets = [0, 16], sizes = [8, 16], strides = [1, 1]} : vector<8x32xf32> to vector<8x16xf32>
    %116 = tpu.concatenate %114, %115 in 0 : vector<8x16xf32>, vector<8x16xf32> -> vector<16x16xf32>
    %c0_56 = arith.constant 0 : index
    %c0_57 = arith.constant 0 : index
    %117 = vector.load %arg16[%c0_56, %c0_57] : memref<16x16xbf16, #tpu.memory_space<vmem>>, vector<16x16xbf16>
    %118 = arith.truncf %116 : vector<16x16xf32> to vector<16x16xbf16>
    %cst_58 = arith.constant dense<0.000000e+00> : vector<16x16xf32>
    %119 = tpu.matmul %117, %118, %cst_58 {dimension_numbers = #tpu.dot_dimension_numbers<[1], [0], [0], [1], [0, 0, 1, 1], [], []>} : vector<16x16xbf16>, vector<16x16xbf16>, vector<16x16xf32> -> vector<16x16xf32>
    %c0_59 = arith.constant 0 : index
    %c0_60 = arith.constant 0 : index
    %120 = vector.load %arg17[%c0_59, %c0_60] : memref<16x1xf32, #tpu.memory_space<vmem>>, vector<16x1xf32>
    %121 = vector.broadcast %120 : vector<16x1xf32> to vector<16x16xf32>
    %122 = arith.addf %119, %121 : vector<16x16xf32>
    %123 = vector.extract_strided_slice %122 {offsets = [0, 0], sizes = [8, 16], strides = [1, 1]} : vector<16x16xf32> to vector<8x16xf32>
    %124 = math.tanh %123 : vector<8x16xf32>
    %125 = vector.extract_strided_slice %122 {offsets = [8, 0], sizes = [8, 16], strides = [1, 1]} : vector<16x16xf32> to vector<8x16xf32>
    %126 = arith.negf %125 : vector<8x16xf32>
    %127 = math.exp %126 : vector<8x16xf32>
    %cst_61 = arith.constant 1.000000e+00 : f32
    %128 = vector.broadcast %cst_61 : f32 to vector<8x16xf32>
    %129 = arith.addf %128, %127 : vector<8x16xf32>
    %130 = arith.divf %128, %129 : vector<8x16xf32>
    %131 = arith.mulf %124, %130 : vector<8x16xf32>
    %c0_62 = arith.constant 0 : index
    %c0_63 = arith.constant 0 : index
    %132 = vector.load %arg18[%c0_62, %c0_63] : memref<72x8xbf16, #tpu.memory_space<vmem>>, vector<72x8xbf16>
    %133 = arith.truncf %131 : vector<8x16xf32> to vector<8x16xbf16>
    %cst_64 = arith.constant dense<0.000000e+00> : vector<72x16xf32>
    %134 = tpu.matmul %132, %133, %cst_64 {dimension_numbers = #tpu.dot_dimension_numbers<[1], [0], [0], [1], [0, 0, 1, 1], [], []>} : vector<72x8xbf16>, vector<8x16xbf16>, vector<72x16xf32> -> vector<72x16xf32>
    %c0_65 = arith.constant 0 : index
    %c0_66 = arith.constant 0 : index
    %135 = vector.load %arg19[%c0_65, %c0_66] : memref<72x1xf32, #tpu.memory_space<vmem>>, vector<72x1xf32>
    %136 = vector.broadcast %135 : vector<72x1xf32> to vector<72x16xf32>
    %137 = arith.addf %134, %136 : vector<72x16xf32>
    %138 = vector.extract_strided_slice %137 {offsets = [0, 0], sizes = [64, 16], strides = [1, 1]} : vector<72x16xf32> to vector<64x16xf32>
    %139 = arith.addf %108, %138 : vector<64x16xf32>
    %cst_67 = arith.constant 0.000000e+00 : f32
    %140 = vector.broadcast %cst_67 : f32 to vector<64x16xf32>
    %141 = arith.maximumf %139, %140 : vector<64x16xf32>
    %c0_68 = arith.constant 0 : index
    %c0_69 = arith.constant 0 : index
    %142 = vector.load %arg20[%c0_68, %c0_69] : memref<128x64xbf16, #tpu.memory_space<vmem>>, vector<128x64xbf16>
    %143 = arith.truncf %141 : vector<64x16xf32> to vector<64x16xbf16>
    %cst_70 = arith.constant dense<0.000000e+00> : vector<128x16xf32>
    %144 = tpu.matmul %142, %143, %cst_70 {dimension_numbers = #tpu.dot_dimension_numbers<[1], [0], [0], [1], [0, 0, 1, 1], [], []>} : vector<128x64xbf16>, vector<64x16xbf16>, vector<128x16xf32> -> vector<128x16xf32>
    %c0_71 = arith.constant 0 : index
    %c0_72 = arith.constant 0 : index
    %145 = vector.load %arg21[%c0_71, %c0_72] : memref<128x1xf32, #tpu.memory_space<vmem>>, vector<128x1xf32>
    %146 = vector.broadcast %145 : vector<128x1xf32> to vector<128x16xf32>
    %147 = arith.addf %144, %146 : vector<128x16xf32>
    %cst_73 = arith.constant 0.000000e+00 : f32
    %148 = vector.broadcast %cst_73 : f32 to vector<128x16xf32>
    %149 = arith.maximumf %147, %148 : vector<128x16xf32>
    %c0_74 = arith.constant 0 : index
    %c0_75 = arith.constant 0 : index
    %150 = vector.load %arg22[%c0_74, %c0_75] : memref<8x128xbf16, #tpu.memory_space<vmem>>, vector<8x128xbf16>
    %151 = arith.truncf %149 : vector<128x16xf32> to vector<128x16xbf16>
    %cst_76 = arith.constant dense<0.000000e+00> : vector<8x16xf32>
    %152 = tpu.matmul %150, %151, %cst_76 {dimension_numbers = #tpu.dot_dimension_numbers<[1], [0], [0], [1], [0, 0, 1, 1], [], []>} : vector<8x128xbf16>, vector<128x16xbf16>, vector<8x16xf32> -> vector<8x16xf32>
    %c0_77 = arith.constant 0 : index
    %c0_78 = arith.constant 0 : index
    %153 = vector.load %arg23[%c0_77, %c0_78] : memref<8x1xf32, #tpu.memory_space<vmem>>, vector<8x1xf32>
    %154 = vector.broadcast %153 : vector<8x1xf32> to vector<8x16xf32>
    %155 = arith.addf %152, %154 : vector<8x16xf32>
    %156 = vector.extract_strided_slice %155 {offsets = [0, 0], sizes = [8, 8], strides = [1, 1]} : vector<8x16xf32> to vector<8x8xf32>
    %c0_79 = arith.constant 0 : index
    %c0_80 = arith.constant 0 : index
    %c0_81 = arith.constant 0 : index
    %157 = vector.load %arg24[%c0_79, %c0_80, %c0_81] : memref<8x2x8xf32, #tpu.memory_space<vmem>>, vector<8x1x8xf32>
    %158 = vector.shape_cast %157 : vector<8x1x8xf32> to vector<8x8xf32>
    %159 = vector.shape_cast %156 : vector<8x8xf32> to vector<8x1x8xf32>
    tpu.vector_store %arg24[%c0_79, %c0_80, %c0_81], %159 {strides = array<i32>} : memref<8x2x8xf32, #tpu.memory_space<vmem>>, vector<8x1x8xf32>,
    %160 = vector.extract_strided_slice %155 {offsets = [0, 8], sizes = [8, 8], strides = [1, 1]} : vector<8x16xf32> to vector<8x8xf32>
    %c0_82 = arith.constant 0 : index
    %c1_83 = arith.constant 1 : index
    %c0_84 = arith.constant 0 : index
    %161 = vector.load %arg24[%c0_82, %c1_83, %c0_84] : memref<8x2x8xf32, #tpu.memory_space<vmem>>, vector<8x1x8xf32>
    %162 = vector.shape_cast %161 : vector<8x1x8xf32> to vector<8x8xf32>
    %163 = vector.shape_cast %160 : vector<8x8xf32> to vector<8x1x8xf32>
    tpu.vector_store %arg24[%c0_82, %c1_83, %c0_84], %163 {strides = array<i32>} : memref<8x2x8xf32, #tpu.memory_space<vmem>>, vector<8x1x8xf32>,
    return
  }
  func.func @transform_0(%arg0: i32) -> (i32, i32, i32) {
    %c0_i32 = arith.constant 0 : i32
    %c0_i32_0 = arith.constant 0 : i32
    %c0_i32_1 = arith.constant 0 : i32
    return %c0_i32, %c0_i32_0, %arg0 : i32, i32, i32
  }
  func.func @transform_1(%arg0: i32) -> (i32, i32) {
    %c0_i32 = arith.constant 0 : i32
    %c0_i32_0 = arith.constant 0 : i32
    %c0_i32_1 = arith.constant 0 : i32
    return %c0_i32, %c0_i32_0 : i32, i32
  }
  func.func @transform_2(%arg0: i32) -> (i32, i32) {
    %c0_i32 = arith.constant 0 : i32
    %c0_i32_0 = arith.constant 0 : i32
    %c0_i32_1 = arith.constant 0 : i32
    return %c0_i32, %c0_i32_0 : i32, i32
  }
  func.func @transform_3(%arg0: i32) -> (i32, i32) {
    %c0_i32 = arith.constant 0 : i32
    %c0_i32_0 = arith.constant 0 : i32
    %c0_i32_1 = arith.constant 0 : i32
    return %c0_i32, %c0_i32_0 : i32, i32
  }
  func.func @transform_4(%arg0: i32) -> (i32, i32) {
    %c0_i32 = arith.constant 0 : i32
    %c0_i32_0 = arith.constant 0 : i32
    %c0_i32_1 = arith.constant 0 : i32
    return %c0_i32, %c0_i32_0 : i32, i32
  }
  func.func @transform_5(%arg0: i32) -> (i32, i32) {
    %c0_i32 = arith.constant 0 : i32
    %c0_i32_0 = arith.constant 0 : i32
    %c0_i32_1 = arith.constant 0 : i32
    return %c0_i32, %c0_i32_0 : i32, i32
  }
  func.func @transform_6(%arg0: i32) -> (i32, i32) {
    %c0_i32 = arith.constant 0 : i32
    %c0_i32_0 = arith.constant 0 : i32
    %c0_i32_1 = arith.constant 0 : i32
    return %c0_i32, %c0_i32_0 : i32, i32
  }
  func.func @transform_7(%arg0: i32) -> (i32, i32) {
    %c0_i32 = arith.constant 0 : i32
    %c0_i32_0 = arith.constant 0 : i32
    %c0_i32_1 = arith.constant 0 : i32
    return %c0_i32, %c0_i32_0 : i32, i32
  }
  func.func @transform_8(%arg0: i32) -> (i32, i32) {
    %c0_i32 = arith.constant 0 : i32
    %c0_i32_0 = arith.constant 0 : i32
    %c0_i32_1 = arith.constant 0 : i32
    return %c0_i32, %c0_i32_0 : i32, i32
  }
  func.func @transform_9(%arg0: i32) -> (i32, i32) {
    %c0_i32 = arith.constant 0 : i32
    %c0_i32_0 = arith.constant 0 : i32
    %c0_i32_1 = arith.constant 0 : i32
    return %c0_i32, %c0_i32_0 : i32, i32
  }
  func.func @transform_10(%arg0: i32) -> (i32, i32) {
    %c0_i32 = arith.constant 0 : i32
    %c0_i32_0 = arith.constant 0 : i32
    %c0_i32_1 = arith.constant 0 : i32
    return %c0_i32, %c0_i32_0 : i32, i32
  }
  func.func @transform_11(%arg0: i32) -> (i32, i32) {
    %c0_i32 = arith.constant 0 : i32
    %c0_i32_0 = arith.constant 0 : i32
    %c0_i32_1 = arith.constant 0 : i32
    return %c0_i32, %c0_i32_0 : i32, i32
  }
  func.func @transform_12(%arg0: i32) -> (i32, i32) {
    %c0_i32 = arith.constant 0 : i32
    %c0_i32_0 = arith.constant 0 : i32
    %c0_i32_1 = arith.constant 0 : i32
    return %c0_i32, %c0_i32_0 : i32, i32
  }
  func.func @transform_13(%arg0: i32) -> (i32, i32) {
    %c0_i32 = arith.constant 0 : i32
    %c0_i32_0 = arith.constant 0 : i32
    %c0_i32_1 = arith.constant 0 : i32
    return %c0_i32, %c0_i32_0 : i32, i32
  }
  func.func @transform_14(%arg0: i32) -> (i32, i32) {
    %c0_i32 = arith.constant 0 : i32
    %c0_i32_0 = arith.constant 0 : i32
    %c0_i32_1 = arith.constant 0 : i32
    return %c0_i32, %c0_i32_0 : i32, i32
  }
  func.func @transform_15(%arg0: i32) -> (i32, i32) {
    %c0_i32 = arith.constant 0 : i32
    %c0_i32_0 = arith.constant 0 : i32
    %c0_i32_1 = arith.constant 0 : i32
    return %c0_i32, %c0_i32_0 : i32, i32
  }
  func.func @transform_16(%arg0: i32) -> (i32, i32) {
    %c0_i32 = arith.constant 0 : i32
    %c0_i32_0 = arith.constant 0 : i32
    %c0_i32_1 = arith.constant 0 : i32
    return %c0_i32, %c0_i32_0 : i32, i32
  }
  func.func @transform_17(%arg0: i32) -> (i32, i32) {
    %c0_i32 = arith.constant 0 : i32
    %c0_i32_0 = arith.constant 0 : i32
    %c0_i32_1 = arith.constant 0 : i32
    return %c0_i32, %c0_i32_0 : i32, i32
  }
  func.func @transform_18(%arg0: i32) -> (i32, i32) {
    %c0_i32 = arith.constant 0 : i32
    %c0_i32_0 = arith.constant 0 : i32
    %c0_i32_1 = arith.constant 0 : i32
    return %c0_i32, %c0_i32_0 : i32, i32
  }
  func.func @transform_19(%arg0: i32) -> (i32, i32) {
    %c0_i32 = arith.constant 0 : i32
    %c0_i32_0 = arith.constant 0 : i32
    %c0_i32_1 = arith.constant 0 : i32
    return %c0_i32, %c0_i32_0 : i32, i32
  }
  func.func @transform_20(%arg0: i32) -> (i32, i32) {
    %c0_i32 = arith.constant 0 : i32
    %c0_i32_0 = arith.constant 0 : i32
    %c0_i32_1 = arith.constant 0 : i32
    return %c0_i32, %c0_i32_0 : i32, i32
  }
  func.func @transform_21(%arg0: i32) -> (i32, i32) {
    %c0_i32 = arith.constant 0 : i32
    %c0_i32_0 = arith.constant 0 : i32
    %c0_i32_1 = arith.constant 0 : i32
    return %c0_i32, %c0_i32_0 : i32, i32
  }
  func.func @transform_22(%arg0: i32) -> (i32, i32) {
    %c0_i32 = arith.constant 0 : i32
    %c0_i32_0 = arith.constant 0 : i32
    %c0_i32_1 = arith.constant 0 : i32
    return %c0_i32, %c0_i32_0 : i32, i32
  }
  func.func @transform_23(%arg0: i32) -> (i32, i32, i32) {
    %c0_i32 = arith.constant 0 : i32
    %c0_i32_0 = arith.constant 0 : i32
    %c0_i32_1 = arith.constant 0 : i32
    return %c0_i32, %c0_i32_0, %arg0 : i32, i32, i32
  }
}

</mosaic_0001>

<llo_original>
// kernel: block_forward.1
$region0: #{block_forward.1}
  #allocation0 [shape = 'u32[]', space=smem, size = 0x4, offset = 0x4, fixed_abs, tag = 'smem constant byte address 0x4 - core index']
  #allocation1 [shape = 'u32[144,128]{1,0:T(1,128)}', space=vmem, size = 0x12000, scoped, tag = 'internal scratch']
  %s0 = inlined_call_operand.vmem [shape: bf16[2,8,8], index: 0, kind: input, shape index: {}]
  %s1 = inlined_call_operand.vmem [shape: bf16[8,2], index: 1, kind: input, shape index: {}]
  %s2 = inlined_call_operand.vmem [shape: f32[8,1], index: 2, kind: input, shape index: {}]
  %s3 = inlined_call_operand.vmem [shape: bf16[16,16], index: 3, kind: input, shape index: {}]
  %s4 = inlined_call_operand.vmem [shape: f32[16,1], index: 4, kind: input, shape index: {}]
  %s5 = inlined_call_operand.vmem [shape: bf16[72,8], index: 5, kind: input, shape index: {}]
  %s6 = inlined_call_operand.vmem [shape: f32[72,1], index: 6, kind: input, shape index: {}]
  %s7 = inlined_call_operand.vmem [shape: bf16[16,16], index: 7, kind: input, shape index: {}]
  %s8 = inlined_call_operand.vmem [shape: f32[16,1], index: 8, kind: input, shape index: {}]
  %s9 = inlined_call_operand.vmem [shape: bf16[72,8], index: 9, kind: input, shape index: {}]
  %s10 = inlined_call_operand.vmem [shape: f32[72,1], index: 10, kind: input, shape index: {}]
  %s11 = inlined_call_operand.vmem [shape: bf16[16,16], index: 11, kind: input, shape index: {}]
  %s12 = inlined_call_operand.vmem [shape: f32[16,1], index: 12, kind: input, shape index: {}]
  %s13 = inlined_call_operand.vmem [shape: bf16[72,8], index: 13, kind: input, shape index: {}]
  %s14 = inlined_call_operand.vmem [shape: f32[72,1], index: 14, kind: input, shape index: {}]
  %s15 = inlined_call_operand.vmem [shape: bf16[16,16], index: 15, kind: input, shape index: {}]
  %s16 = inlined_call_operand.vmem [shape: f32[16,1], index: 16, kind: input, shape index: {}]
  %s17 = inlined_call_operand.vmem [shape: bf16[72,8], index: 17, kind: input, shape index: {}]
  %s18 = inlined_call_operand.vmem [shape: f32[72,1], index: 18, kind: input, shape index: {}]
  %s19 = inlined_call_operand.vmem [shape: bf16[128,64], index: 19, kind: input, shape index: {}]
  %s20 = inlined_call_operand.vmem [shape: f32[128,1], index: 20, kind: input, shape index: {}]
  %s21 = inlined_call_operand.vmem [shape: bf16[8,128], index: 21, kind: input, shape index: {}]
  %s22 = inlined_call_operand.vmem [shape: f32[8,1], index: 22, kind: input, shape index: {}]
  %s23 = inlined_call_operand.vmem [shape: f32[8,2,8], index: 23, kind: output, shape index: {}]
  %s24 = sld [smem:[#allocation0]]
  $region102: #{block_forward.1} parent=0
    _
  %s26 = ssub.s32 1, %s24
  %s27 = scalar_select 0, %s26, %s24
  // Predicated region
  $region2: #{block_forward.1} parent=0 // pred_check
    _
  $region3: #{block_forward.1} parent=0 // pred_check_branch
    %29 = sbr.rel (0) target = $region5
  $region4: #{block_forward.1} parent=0 // pred_region
    _
  $region5: #{block_forward.1} parent=0 // pred_fallthru
    _
  // Predicated region
  $region6: #{block_forward.1} parent=0 // pred_check
    _
  $region7: #{block_forward.1} parent=0 // pred_check_branch
    %31 = sbr.rel (0) target = $region9
  $region8: #{block_forward.1} parent=0 // pred_region
    _
  $region9: #{block_forward.1} parent=0 // pred_fallthru
    _
  // Predicated region
  $region10: #{block_forward.1} parent=0 // pred_check
    _
  $region11: #{block_forward.1} parent=0 // pred_check_branch
    %33 = sbr.rel (0) target = $region13
  $region12: #{block_forward.1} parent=0 // pred_region
    _
  $region13: #{block_forward.1} parent=0 // pred_fallthru
    _
  // Predicated region
  $region14: #{block_forward.1} parent=0 // pred_check
    _
  $region15: #{block_forward.1} parent=0 // pred_check_branch
    %35 = sbr.rel (0) target = $region17
  $region16: #{block_forward.1} parent=0 // pred_region
    _
  $region17: #{block_forward.1} parent=0 // pred_fallthru
    _
  // Predicated region
  $region18: #{block_forward.1} parent=0 // pred_check
    _
  $region19: #{block_forward.1} parent=0 // pred_check_branch
    %37 = sbr.rel (0) target = $region21
  $region20: #{block_forward.1} parent=0 // pred_region
    _
  $region21: #{block_forward.1} parent=0 // pred_fallthru
    _
  // Predicated region
  $region22: #{block_forward.1} parent=0 // pred_check
    _
  $region23: #{block_forward.1} parent=0 // pred_check_branch
    %39 = sbr.rel (0) target = $region25
  $region24: #{block_forward.1} parent=0 // pred_region
    _
  $region25: #{block_forward.1} parent=0 // pred_fallthru
    _
  // Predicated region
  $region26: #{block_forward.1} parent=0 // pred_check
    _
  $region27: #{block_forward.1} parent=0 // pred_check_branch
    %41 = sbr.rel (0) target = $region29
  $region28: #{block_forward.1} parent=0 // pred_region
    _
  $region29: #{block_forward.1} parent=0 // pred_fallthru
    _
  // Predicated region
  $region30: #{block_forward.1} parent=0 // pred_check
    _
  $region31: #{block_forward.1} parent=0 // pred_check_branch
    %43 = sbr.rel (0) target = $region33
  $region32: #{block_forward.1} parent=0 // pred_region
    _
  $region33: #{block_forward.1} parent=0 // pred_fallthru
    _
  // Predicated region
  $region34: #{block_forward.1} parent=0 // pred_check
    _
  $region35: #{block_forward.1} parent=0 // pred_check_branch
    %45 = sbr.rel (0) target = $region37
  $region36: #{block_forward.1} parent=0 // pred_region
    _
  $region37: #{block_forward.1} parent=0 // pred_fallthru
    _
  // Predicated region
  $region38: #{block_forward.1} parent=0 // pred_check
    _
  $region39: #{block_forward.1} parent=0 // pred_check_branch
    %47 = sbr.rel (0) target = $region41
  $region40: #{block_forward.1} parent=0 // pred_region
    _
  $region41: #{block_forward.1} parent=0 // pred_fallthru
    _
  // Predicated region
  $region42: #{block_forward.1} parent=0 // pred_check
    _
  $region43: #{block_forward.1} parent=0 // pred_check_branch
    %49 = sbr.rel (0) target = $region45
  $region44: #{block_forward.1} parent=0 // pred_region
    _
  $region45: #{block_forward.1} parent=0 // pred_fallthru
    _
  // Predicated region
  $region46: #{block_forward.1} parent=0 // pred_check
    _
  $region47: #{block_forward.1} parent=0 // pred_check_branch
    %51 = sbr.rel (0) target = $region49
  $region48: #{block_forward.1} parent=0 // pred_region
    _
  $region49: #{block_forward.1} parent=0 // pred_fallthru
    _
  // Predicated region
  $region50: #{block_forward.1} parent=0 // pred_check
    _
  $region51: #{block_forward.1} parent=0 // pred_check_branch
    %53 = sbr.rel (0) target = $region53
  $region52: #{block_forward.1} parent=0 // pred_region
    _
  $region53: #{block_forward.1} parent=0 // pred_fallthru
    _
  // Predicated region
  $region54: #{block_forward.1} parent=0 // pred_check
    _
  $region55: #{block_forward.1} parent=0 // pred_check_branch
    %55 = sbr.rel (0) target = $region57
  $region56: #{block_forward.1} parent=0 // pred_region
    _
  $region57: #{block_forward.1} parent=0 // pred_fallthru
    _
  // Predicated region
  $region58: #{block_forward.1} parent=0 // pred_check
    _
  $region59: #{block_forward.1} parent=0 // pred_check_branch
    %57 = sbr.rel (0) target = $region61
  $region60: #{block_forward.1} parent=0 // pred_region
    _
  $region61: #{block_forward.1} parent=0 // pred_fallthru
    _
  // Predicated region
  $region62: #{block_forward.1} parent=0 // pred_check
    _
  $region63: #{block_forward.1} parent=0 // pred_check_branch
    %59 = sbr.rel (0) target = $region65
  $region64: #{block_forward.1} parent=0 // pred_region
    _
  $region65: #{block_forward.1} parent=0 // pred_fallthru
    _
  // Predicated region
  $region66: #{block_forward.1} parent=0 // pred_check
    _
  $region67: #{block_forward.1} parent=0 // pred_check_branch
    %61 = sbr.rel (0) target = $region69
  $region68: #{block_forward.1} parent=0 // pred_region
    _
  $region69: #{block_forward.1} parent=0 // pred_fallthru
    _
  // Predicated region
  $region70: #{block_forward.1} parent=0 // pred_check
    _
  $region71: #{block_forward.1} parent=0 // pred_check_branch
    %63 = sbr.rel (0) target = $region73
  $region72: #{block_forward.1} parent=0 // pred_region
    _
  $region73: #{block_forward.1} parent=0 // pred_fallthru
    _
  // Predicated region
  $region74: #{block_forward.1} parent=0 // pred_check
    _
  $region75: #{block_forward.1} parent=0 // pred_check_branch
    %65 = sbr.rel (0) target = $region77
  $region76: #{block_forward.1} parent=0 // pred_region
    _
  $region77: #{block_forward.1} parent=0 // pred_fallthru
    _
  // Predicated region
  $region78: #{block_forward.1} parent=0 // pred_check
    _
  $region79: #{block_forward.1} parent=0 // pred_check_branch
    %67 = sbr.rel (0) target = $region81
  $region80: #{block_forward.1} parent=0 // pred_region
    _
  $region81: #{block_forward.1} parent=0 // pred_fallthru
    _
  // Predicated region
  $region82: #{block_forward.1} parent=0 // pred_check
    _
  $region83: #{block_forward.1} parent=0 // pred_check_branch
    %69 = sbr.rel (0) target = $region85
  $region84: #{block_forward.1} parent=0 // pred_region
    _
  $region85: #{block_forward.1} parent=0 // pred_fallthru
    _
  // Predicated region
  $region86: #{block_forward.1} parent=0 // pred_check
    _
  $region87: #{block_forward.1} parent=0 // pred_check_branch
    %71 = sbr.rel (0) target = $region89
  $region88: #{block_forward.1} parent=0 // pred_region
    _
  $region89: #{block_forward.1} parent=0 // pred_fallthru
    _
  // Predicated region
  $region90: #{block_forward.1} parent=0 // pred_check
    _
  $region91: #{block_forward.1} parent=0 // pred_check_branch
    %73 = sbr.rel (0) target = $region93
  $region92: #{block_forward.1} parent=0 // pred_region
    _
  $region93: #{block_forward.1} parent=0 // pred_fallthru
    _
  %v75 = vld [vmem:[%s0] sm:$0x1]
  %v76 = vld [vmem:[%s0 + $0x4] sm:$0x1]
  %v77 = vld [vmem:[%s0] sm:$0x2]
  %v78 = vld [vmem:[%s0 + $0x4] sm:$0x2]
  %v79 = vld [vmem:[%s0] sm:$0x4]
  %v80 = vld [vmem:[%s0 + $0x4] sm:$0x4]
  %v81 = vld [vmem:[%s0] sm:$0x8]
  %v82 = vld [vmem:[%s0 + $0x4] sm:$0x8]
  %v85 = vunpack.c.l.b16 %v75
  %v86 = vunpack.c.l.b16 %v76
  %v87 = vpack.c.b16 %v85, %v85
  %v88 = vpack.c.b16 %v86, %v86
  %v89 = vunpack.c.l.b16 %v87
  %v90 = vunpack.c.l.b16 %v88
  %v91 = vrot.slane %v90, 7
  %vm92 = vcmask 1041409
  %v93 = vsel %vm92, %v91, %v89
  %v94 = vpack.c.b16 %v93, %v93
  %v95 = vrot.slane %v89, 1
  %v96 = vsel %vm92, %v90, %v95
  %v97 = vpack.c.b16 %v96, %v96
  %98 = vrot.lane.b32.xlu0 %v97, 8
  %v99 = vpop.permute.xlu0 %98
  %v102 = vunpack.c.l.b16 %v77
  %v103 = vunpack.c.l.b16 %v78
  %v104 = vpack.c.b16 %v102, %v102
  %v105 = vpack.c.b16 %v103, %v103
  %v106 = vunpack.c.l.b16 %v104
  %v107 = vunpack.c.l.b16 %v105
  %v108 = vrot.slane %v106, 2
  %v109 = vrot.slane %v107, 1
  %v110 = vsel %vm92, %v109, %v108
  %v111 = vpack.c.b16 %v110, %v110
  %112 = vrot.lane.b32.xlu0 %v111, 16
  %v113 = vpop.permute.xlu0 %112
  %v114 = vrot.slane %v106, 3
  %v115 = vrot.slane %v107, 2
  %v116 = vsel %vm92, %v115, %v114
  %v117 = vpack.c.b16 %v116, %v116
  %118 = vrot.lane.b32.xlu0 %v117, 24
  %v119 = vpop.permute.xlu0 %118
  %v122 = vunpack.c.l.b16 %v79
  %v123 = vunpack.c.l.b16 %v80
  %v124 = vpack.c.b16 %v122, %v122
  %v125 = vpack.c.b16 %v123, %v123
  %v126 = vunpack.c.l.b16 %v124
  %v127 = vunpack.c.l.b16 %v125
  %v128 = vrot.slane %v126, 4
  %v129 = vrot.slane %v127, 3
  %v130 = vsel %vm92, %v129, %v128
  %v131 = vpack.c.b16 %v130, %v130
  %132 = vrot.lane.b32.xlu0 %v131, 32
  %v133 = vpop.permute.xlu0 %132
  %v134 = vrot.slane %v126, 5
  %v135 = vrot.slane %v127, 4
  %v136 = vsel %vm92, %v135, %v134
  %v137 = vpack.c.b16 %v136, %v136
  %138 = vrot.lane.b32.xlu0 %v137, 40
  %v139 = vpop.permute.xlu0 %138
  %v142 = vunpack.c.l.b16 %v81
  %v143 = vunpack.c.l.b16 %v82
  %v144 = vpack.c.b16 %v142, %v142
  %v145 = vpack.c.b16 %v143, %v143
  %v146 = vunpack.c.l.b16 %v144
  %v147 = vunpack.c.l.b16 %v145
  %v148 = vrot.slane %v146, 6
  %v149 = vrot.slane %v147, 5
  %v150 = vsel %vm92, %v149, %v148
  %v151 = vpack.c.b16 %v150, %v150
  %152 = vrot.lane.b32.xlu0 %v151, 48
  %v153 = vpop.permute.xlu0 %152
  %v154 = vrot.slane %v146, 7
  %v155 = vrot.slane %v147, 6
  %v156 = vsel %vm92, %v155, %v154
  %v157 = vpack.c.b16 %v156, %v156
  %158 = vrot.lane.b32.xlu0 %v157, 56
  %v159 = vpop.permute.xlu0 %158
  %vm160 = vcmask 64512
  %v163 = vsel %vm160, %v94, %v99
  %vm164 = vcmask 130048
  %v166 = vsel %vm164, %v163, %v113
  %vm167 = vcmask 195584
  %v169 = vsel %vm167, %v166, %v119
  %vm170 = vcmask 261120
  %v172 = vsel %vm170, %v169, %v133
  %vm173 = vcmask 326656
  %v175 = vsel %vm173, %v172, %v139
  %vm176 = vcmask 392192
  %v178 = vsel %vm176, %v175, %v153
  %vm179 = vcmask 457728
  %v181 = vsel %vm179, %v178, %v159
  %v182 = vld [vmem:[%s1] sm:$0xf]
  %v183 = vld [vmem:[%s2] sm:$0xff]
  %185 = vset.pattern.permute.xlu0 0
  %186 = vperm.xlu0 %185, %v183
  %v187 = vpop.permute.xlu0 %186
  %vm189 = vcmask 15360
  %v191 = vsel %vm189, %v182, 0
  %vm193 = vcmask 1040384
  %v194 = vsel %vm193, %v181, 0
  %196 = vmatprep.subr.bf16.mxu0 0
  %197 = vmatpush1.bf16.msra.mxu0 %v194
  %198 = vmatprep.subr.bf16.mxu0 0
  %199 = vmatpush1.bf16.msra.mxu0 0
  %200 = vmatprep.subr.bf16.mxu0 0
  %201 = vmatpush1.bf16.msra.mxu0 0
  %202 = vmatprep.subr.bf16.mxu0 0
  %203 = vmatpush1.bf16.msra.mxu0 0
  %204 = vmatprep.subr.bf16.mxu0 0
  %205 = vmatpush1.bf16.msra.mxu0 0
  %206 = vmatprep.subr.bf16.mxu0 0
  %207 = vmatpush1.bf16.msra.mxu0 0
  %208 = vmatprep.subr.bf16.mxu0 0
  %209 = vmatpush1.bf16.msra.mxu0 0
  %210 = vmatprep.subr.bf16.mxu0 0
  %211 = vmatpush1.bf16.msra.mxu0 0
  %212 = vmatprep.subr.bf16.mxu0 0
  %213 = vmatpush1.bf16.msra.mxu0 0
  %214 = vmatprep.subr.bf16.mxu0 0
  %215 = vmatpush1.bf16.msra.mxu0 0
  %216 = vmatprep.subr.bf16.mxu0 0
  %217 = vmatpush1.bf16.msra.mxu0 0
  %218 = vmatprep.subr.bf16.mxu0 0
  %219 = vmatpush1.bf16.msra.mxu0 0
  %220 = vmatprep.subr.bf16.mxu0 0
  %221 = vmatpush1.bf16.msra.mxu0 0
  %222 = vmatprep.subr.bf16.mxu0 0
  %223 = vmatpush1.bf16.msra.mxu0 0
  %224 = vmatprep.subr.bf16.mxu0 0
  %225 = vmatpush1.bf16.msra.mxu0 0
  %226 = vmatprep.subr.bf16.mxu0 0
  %227 = vmatpush1.bf16.msra.mxu0 0
  %228 = vmatprep.mubr.bf16.mxu0 0
  %229 = vmatmul.mubr.bf16.gmra.mrb[0].mxu0 %v191
  %v230 = vpop.f32.mrb[0].mxu0
  %v231 = vadd.f32 %v187, %v230
  %v232 = vpop.f32.mrb[0].mxu0
  %v233 = vpop.f32.mrb[0].mxu0
  %v234 = vpop.f32.mrb[0].mxu0
  %235 = vdwg.mxu0
  %237 = vrot.lane.b32.xlu0 %v231, 120
  %v238 = vpop.permute.xlu0 %237
  %v240 = vld [vmem:[%s3] sm:$0xf]
  %v241 = vld [vmem:[%s3 + $0x4] sm:$0xf]
  %v242 = vpack.c.bf16 %v238, %v231
  %v243 = vld [vmem:[%s4] sm:$0xff]
  %v244 = vld [vmem:[%s4 + $0x8] sm:$0xff]
  %246 = vset.pattern.permute.xlu0 0
  %247 = vperm.xlu0 %246, %v243
  %v248 = vpop.permute.xlu0 %247
  %251 = vset.pattern.permute.xlu0 0
  %252 = vperm.xlu0 %251, %v244
  %v253 = vpop.permute.xlu0 %252
  %v257 = vunpack.c.l.b16 %v240
  %v258 = vunpack.c.l.b16 %v241
  %v259 = vpack.c.b16 %v258, %v257
  %v261 = vsel %vm164, %v259, 0
  %263 = vmatprep.subr.bf16.mxu0 0
  %264 = vmatpush1.bf16.msra.mxu0 %v242
  %265 = vmatprep.subr.bf16.mxu0 0
  %266 = vmatpush1.bf16.msra.mxu0 0
  %267 = vmatprep.subr.bf16.mxu0 0
  %268 = vmatpush1.bf16.msra.mxu0 0
  %269 = vmatprep.subr.bf16.mxu0 0
  %270 = vmatpush1.bf16.msra.mxu0 0
  %271 = vmatprep.subr.bf16.mxu0 0
  %272 = vmatpush1.bf16.msra.mxu0 0
  %273 = vmatprep.subr.bf16.mxu0 0
  %274 = vmatpush1.bf16.msra.mxu0 0
  %275 = vmatprep.subr.bf16.mxu0 0
  %276 = vmatpush1.bf16.msra.mxu0 0
  %277 = vmatprep.subr.bf16.mxu0 0
  %278 = vmatpush1.bf16.msra.mxu0 0
  %279 = vmatprep.subr.bf16.mxu0 0
  %280 = vmatpush1.bf16.msra.mxu0 0
  %281 = vmatprep.subr.bf16.mxu0 0
  %282 = vmatpush1.bf16.msra.mxu0 0
  %283 = vmatprep.subr.bf16.mxu0 0
  %284 = vmatpush1.bf16.msra.mxu0 0
  %285 = vmatprep.subr.bf16.mxu0 0
  %286 = vmatpush1.bf16.msra.mxu0 0
  %287 = vmatprep.subr.bf16.mxu0 0
  %288 = vmatpush1.bf16.msra.mxu0 0
  %289 = vmatprep.subr.bf16.mxu0 0
  %290 = vmatpush1.bf16.msra.mxu0 0
  %291 = vmatprep.subr.bf16.mxu0 0
  %292 = vmatpush1.bf16.msra.mxu0 0
  %293 = vmatprep.subr.bf16.mxu0 0
  %294 = vmatpush1.bf16.msra.mxu0 0
  %295 = vmatprep.mubr.bf16.mxu0 0
  %296 = vmatmul.mubr.bf16.gmra.mrb[0].mxu0 %v261
  %v297 = vpop.f32.mrb[0].mxu0
  %v298 = vadd.f32 %v248, %v297
  %v299 = vpop.f32.mrb[0].mxu0
  %v300 = vpop.f32.mrb[0].mxu0
  %v301 = vadd.f32 %v253, %v300
  %v302 = vpop.f32.mrb[0].mxu0
  %303 = vdwg.mxu0
  %v304 = vtanh.pop %v298
  %v305 = vxor.u32 %v301, 2147483648
  %v306 = vmul.f32 %v305, 1.442695
  %v307 = vpow.pop %v306
  %v308 = vadd.f32 %v307, 1.0
  %v309 = vrcp.pop %v308
  %v310 = vmul.f32 1.0, %v309
  %v311 = vmul.f32 %v304, %v310
  %v312 = vld [vmem:[%s5] sm:$0xf]
  %v313 = vld [vmem:[%s5 + $0x4] sm:$0xf]
  %v314 = vld [vmem:[%s5 + $0x8] sm:$0xf]
  %v315 = vld [vmem:[%s5 + $0xc] sm:$0xf]
  %v316 = vld [vmem:[%s5 + $0x10] sm:$0xf]
  %v317 = vld [vmem:[%s5 + $0x14] sm:$0xf]
  %v318 = vld [vmem:[%s5 + $0x18] sm:$0xf]
  %v319 = vld [vmem:[%s5 + $0x1c] sm:$0xf]
  %v320 = vld [vmem:[%s5 + $0x20] sm:$0xf]
  %v321 = vpack.c.bf16 %v311, %v311
  %v322 = vld [vmem:[%s6] sm:$0xff]
  %v323 = vld [vmem:[%s6 + $0x8] sm:$0xff]
  %v324 = vld [vmem:[%s6 + $0x10] sm:$0xff]
  %v325 = vld [vmem:[%s6 + $0x18] sm:$0xff]
  %v326 = vld [vmem:[%s6 + $0x20] sm:$0xff]
  %v327 = vld [vmem:[%s6 + $0x28] sm:$0xff]
  %v328 = vld [vmem:[%s6 + $0x30] sm:$0xff]
  %v329 = vld [vmem:[%s6 + $0x38] sm:$0xff]
  %v330 = vld [vmem:[%s6 + $0x40] sm:$0xff]
  %332 = vset.pattern.permute.xlu0 0
  %333 = vperm.xlu0 %332, %v322
  %v334 = vpop.permute.xlu0 %333
  %337 = vset.pattern.permute.xlu0 0
  %338 = vperm.xlu0 %337, %v323
  %v339 = vpop.permute.xlu0 %338
  %342 = vset.pattern.permute.xlu0 0
  %343 = vperm.xlu0 %342, %v324
  %v344 = vpop.permute.xlu0 %343
  %347 = vset.pattern.permute.xlu0 0
  %348 = vperm.xlu0 %347, %v325
  %v349 = vpop.permute.xlu0 %348
  %352 = vset.pattern.permute.xlu0 0
  %353 = vperm.xlu0 %352, %v326
  %v354 = vpop.permute.xlu0 %353
  %357 = vset.pattern.permute.xlu0 0
  %358 = vperm.xlu0 %357, %v327
  %v359 = vpop.permute.xlu0 %358
  %362 = vset.pattern.permute.xlu0 0
  %363 = vperm.xlu0 %362, %v328
  %v364 = vpop.permute.xlu0 %363
  %367 = vset.pattern.permute.xlu0 0
  %368 = vperm.xlu0 %367, %v329
  %v369 = vpop.permute.xlu0 %368
  %372 = vset.pattern.permute.xlu0 0
  %373 = vperm.xlu0 %372, %v330
  %v374 = vpop.permute.xlu0 %373
  %v385 = vunpack.c.l.b16 %v312
  %v386 = vunpack.c.l.b16 %v313
  %v387 = vunpack.c.l.b16 %v314
  %v388 = vunpack.c.l.b16 %v315
  %v389 = vunpack.c.l.b16 %v316
  %v390 = vunpack.c.l.b16 %v317
  %v391 = vunpack.c.l.b16 %v318
  %v392 = vunpack.c.l.b16 %v319
  %v393 = vunpack.c.l.b16 %v320
  %v394 = vpack.c.b16 %v386, %v385
  %v395 = vpack.c.b16 %v388, %v387
  %v396 = vpack.c.b16 %v390, %v389
  %v397 = vpack.c.b16 %v392, %v391
  %v398 = vpack.c.b16 %v393, %v393
  %v400 = vsel %vm160, %v394, 0
  %v403 = vsel %vm160, %v395, 0
  %v406 = vsel %vm160, %v396, 0
  %v409 = vsel %vm160, %v397, 0
  %v412 = vsel %vm160, %v398, 0
  %vm414 = vcmask 1043456
  %v416 = vsel %vm414, %v321, 0
  %418 = vmatprep.subr.bf16.mxu0 0
  %419 = vmatpush1.bf16.msra.mxu0 %v416
  %420 = vmatprep.subr.bf16.mxu0 0
  %421 = vmatpush1.bf16.msra.mxu0 0
  %422 = vmatprep.subr.bf16.mxu0 0
  %423 = vmatpush1.bf16.msra.mxu0 0
  %424 = vmatprep.subr.bf16.mxu0 0
  %425 = vmatpush1.bf16.msra.mxu0 0
  %426 = vmatprep.subr.bf16.mxu0 0
  %427 = vmatpush1.bf16.msra.mxu0 0
  %428 = vmatprep.subr.bf16.mxu0 0
  %429 = vmatpush1.bf16.msra.mxu0 0
  %430 = vmatprep.subr.bf16.mxu0 0
  %431 = vmatpush1.bf16.msra.mxu0 0
  %432 = vmatprep.subr.bf16.mxu0 0
  %433 = vmatpush1.bf16.msra.mxu0 0
  %434 = vmatprep.subr.bf16.mxu0 0
  %435 = vmatpush1.bf16.msra.mxu0 0
  %436 = vmatprep.subr.bf16.mxu0 0
  %437 = vmatpush1.bf16.msra.mxu0 0
  %438 = vmatprep.subr.bf16.mxu0 0
  %439 = vmatpush1.bf16.msra.mxu0 0
  %440 = vmatprep.subr.bf16.mxu0 0
  %441 = vmatpush1.bf16.msra.mxu0 0
  %442 = vmatprep.subr.bf16.mxu0 0
  %443 = vmatpush1.bf16.msra.mxu0 0
  %444 = vmatprep.subr.bf16.mxu0 0
  %445 = vmatpush1.bf16.msra.mxu0 0
  %446 = vmatprep.subr.bf16.mxu0 0
  %447 = vmatpush1.bf16.msra.mxu0 0
  %448 = vmatprep.subr.bf16.mxu0 0
  %449 = vmatpush1.bf16.msra.mxu0 0
  %450 = vmatprep.mubr.bf16.mxu0 0
  %451 = vmatmul.mubr.bf16.gmra.mrb[0].mxu0 %v400
  %v452 = vpop.f32.mrb[0].mxu0
  %v453 = vadd.f32 %v334, %v452
  %v454 = vpop.f32.mrb[0].mxu0
  %v455 = vpop.f32.mrb[0].mxu0
  %v456 = vadd.f32 %v339, %v455
  %v457 = vpop.f32.mrb[0].mxu0
  %458 = vmatprep.mubr.bf16.mxu0 0
  %459 = vmatmul.mubr.bf16.gmra.mrb[0].mxu0 %v403
  %v460 = vpop.f32.mrb[0].mxu0
  %v461 = vadd.f32 %v344, %v460
  %v462 = vpop.f32.mrb[0].mxu0
  %v463 = vpop.f32.mrb[0].mxu0
  %v464 = vadd.f32 %v349, %v463
  %v465 = vpop.f32.mrb[0].mxu0
  %466 = vmatprep.mubr.bf16.mxu0 0
  %467 = vmatmul.mubr.bf16.gmra.mrb[0].mxu0 %v406
  %v468 = vpop.f32.mrb[0].mxu0
  %v469 = vadd.f32 %v354, %v468
  %v470 = vpop.f32.mrb[0].mxu0
  %v471 = vpop.f32.mrb[0].mxu0
  %v472 = vadd.f32 %v359, %v471
  %v473 = vpop.f32.mrb[0].mxu0
  %474 = vmatprep.mubr.bf16.mxu0 0
  %475 = vmatmul.mubr.bf16.gmra.mrb[0].mxu0 %v409
  %v476 = vpop.f32.mrb[0].mxu0
  %v477 = vadd.f32 %v364, %v476
  %v478 = vpop.f32.mrb[0].mxu0
  %v479 = vpop.f32.mrb[0].mxu0
  %v480 = vadd.f32 %v369, %v479
  %v481 = vpop.f32.mrb[0].mxu0
  %482 = vmatprep.mubr.bf16.mxu0 0
  %483 = vmatmul.mubr.bf16.gmra.mrb[0].mxu0 %v412
  %v484 = vpop.f32.mrb[0].mxu0
  %v485 = vadd.f32 %v374, %v484
  %v486 = vpop.f32.mrb[0].mxu0
  %v487 = vpop.f32.mrb[0].mxu0
  %v488 = vpop.f32.mrb[0].mxu0
  %489 = vdwg.mxu0
  %v490 = vadd.f32 %v485, %v238
  %v491 = vmul.f32 %v490, 0.999995
  %493 = vrot.lane.b32.xlu0 %v491, 112
  %v494 = vpop.permute.xlu0 %493
  %v496 = vld [vmem:[%s7] sm:$0xf]
  %v497 = vld [vmem:[%s7 + $0x4] sm:$0xf]
  %v498 = vpack.c.bf16 %v494, %v491
  %v499 = vld [vmem:[%s8] sm:$0xff]
  %v500 = vld [vmem:[%s8 + $0x8] sm:$0xff]
  %502 = vset.pattern.permute.xlu0 0
  %503 = vperm.xlu0 %502, %v499
  %v504 = vpop.permute.xlu0 %503
  %507 = vset.pattern.permute.xlu0 0
  %508 = vperm.xlu0 %507, %v500
  %v509 = vpop.permute.xlu0 %508
  %v513 = vunpack.c.l.b16 %v496
  %v514 = vunpack.c.l.b16 %v497
  %v515 = vpack.c.b16 %v514, %v513
  %v517 = vsel %vm164, %v515, 0
  %519 = vmatprep.subr.bf16.mxu0 0
  %520 = vmatpush1.bf16.msra.mxu0 %v498
  %521 = vmatprep.subr.bf16.mxu0 0
  %522 = vmatpush1.bf16.msra.mxu0 0
  %523 = vmatprep.subr.bf16.mxu0 0
  %524 = vmatpush1.bf16.msra.mxu0 0
  %525 = vmatprep.subr.bf16.mxu0 0
  %526 = vmatpush1.bf16.msra.mxu0 0
  %527 = vmatprep.subr.bf16.mxu0 0
  %528 = vmatpush1.bf16.msra.mxu0 0
  %529 = vmatprep.subr.bf16.mxu0 0
  %530 = vmatpush1.bf16.msra.mxu0 0
  %531 = vmatprep.subr.bf16.mxu0 0
  %532 = vmatpush1.bf16.msra.mxu0 0
  %533 = vmatprep.subr.bf16.mxu0 0
  %534 = vmatpush1.bf16.msra.mxu0 0
  %535 = vmatprep.subr.bf16.mxu0 0
  %536 = vmatpush1.bf16.msra.mxu0 0
  %537 = vmatprep.subr.bf16.mxu0 0
  %538 = vmatpush1.bf16.msra.mxu0 0
  %539 = vmatprep.subr.bf16.mxu0 0
  %540 = vmatpush1.bf16.msra.mxu0 0
  %541 = vmatprep.subr.bf16.mxu0 0
  %542 = vmatpush1.bf16.msra.mxu0 0
  %543 = vmatprep.subr.bf16.mxu0 0
  %544 = vmatpush1.bf16.msra.mxu0 0
  %545 = vmatprep.subr.bf16.mxu0 0
  %546 = vmatpush1.bf16.msra.mxu0 0
  %547 = vmatprep.subr.bf16.mxu0 0
  %548 = vmatpush1.bf16.msra.mxu0 0
  %549 = vmatprep.subr.bf16.mxu0 0
  %550 = vmatpush1.bf16.msra.mxu0 0
  %551 = vmatprep.mubr.bf16.mxu0 0
  %552 = vmatmul.mubr.bf16.gmra.mrb[0].mxu0 %v517
  %v553 = vpop.f32.mrb[0].mxu0
  %v554 = vadd.f32 %v504, %v553
  %v555 = vpop.f32.mrb[0].mxu0
  %v556 = vpop.f32.mrb[0].mxu0
  %v557 = vadd.f32 %v509, %v556
  %v558 = vpop.f32.mrb[0].mxu0
  %559 = vdwg.mxu0
  %v560 = vtanh.pop %v554
  %v561 = vxor.u32 %v557, 2147483648
  %v562 = vmul.f32 %v561, 1.442695
  %v563 = vpow.pop %v562
  %v564 = vadd.f32 %v563, 1.0
  %v565 = vrcp.pop %v564
  %v566 = vmul.f32 1.0, %v565
  %v567 = vmul.f32 %v560, %v566
  %v568 = vld [vmem:[%s9] sm:$0xf]
  %v569 = vld [vmem:[%s9 + $0x4] sm:$0xf]
  %v570 = vld [vmem:[%s9 + $0x8] sm:$0xf]
  %v571 = vld [vmem:[%s9 + $0xc] sm:$0xf]
  %v572 = vld [vmem:[%s9 + $0x10] sm:$0xf]
  %v573 = vld [vmem:[%s9 + $0x14] sm:$0xf]
  %v574 = vld [vmem:[%s9 + $0x18] sm:$0xf]
  %v575 = vld [vmem:[%s9 + $0x1c] sm:$0xf]
  %v576 = vld [vmem:[%s9 + $0x20] sm:$0xf]
  %v577 = vpack.c.bf16 %v567, %v567
  %v578 = vld [vmem:[%s10] sm:$0xff]
  %v579 = vld [vmem:[%s10 + $0x8] sm:$0xff]
  %v580 = vld [vmem:[%s10 + $0x10] sm:$0xff]
  %v581 = vld [vmem:[%s10 + $0x18] sm:$0xff]
  %v582 = vld [vmem:[%s10 + $0x20] sm:$0xff]
  %v583 = vld [vmem:[%s10 + $0x28] sm:$0xff]
  %v584 = vld [vmem:[%s10 + $0x30] sm:$0xff]
  %v585 = vld [vmem:[%s10 + $0x38] sm:$0xff]
  %v586 = vld [vmem:[%s10 + $0x40] sm:$0xff]
  %588 = vset.pattern.permute.xlu0 0
  %589 = vperm.xlu0 %588, %v578
  %v590 = vpop.permute.xlu0 %589
  %593 = vset.pattern.permute.xlu0 0
  %594 = vperm.xlu0 %593, %v579
  %v595 = vpop.permute.xlu0 %594
  %598 = vset.pattern.permute.xlu0 0
  %599 = vperm.xlu0 %598, %v580
  %v600 = vpop.permute.xlu0 %599
  %603 = vset.pattern.permute.xlu0 0
  %604 = vperm.xlu0 %603, %v581
  %v605 = vpop.permute.xlu0 %604
  %608 = vset.pattern.permute.xlu0 0
  %609 = vperm.xlu0 %608, %v582
  %v610 = vpop.permute.xlu0 %609
  %613 = vset.pattern.permute.xlu0 0
  %614 = vperm.xlu0 %613, %v583
  %v615 = vpop.permute.xlu0 %614
  %618 = vset.pattern.permute.xlu0 0
  %619 = vperm.xlu0 %618, %v584
  %v620 = vpop.permute.xlu0 %619
  %623 = vset.pattern.permute.xlu0 0
  %624 = vperm.xlu0 %623, %v585
  %v625 = vpop.permute.xlu0 %624
  %628 = vset.pattern.permute.xlu0 0
  %629 = vperm.xlu0 %628, %v586
  %v630 = vpop.permute.xlu0 %629
  %v641 = vunpack.c.l.b16 %v568
  %v642 = vunpack.c.l.b16 %v569
  %v643 = vunpack.c.l.b16 %v570
  %v644 = vunpack.c.l.b16 %v571
  %v645 = vunpack.c.l.b16 %v572
  %v646 = vunpack.c.l.b16 %v573
  %v647 = vunpack.c.l.b16 %v574
  %v648 = vunpack.c.l.b16 %v575
  %v649 = vunpack.c.l.b16 %v576
  %v650 = vpack.c.b16 %v642, %v641
  %v651 = vpack.c.b16 %v644, %v643
  %v652 = vpack.c.b16 %v646, %v645
  %v653 = vpack.c.b16 %v648, %v647
  %v654 = vpack.c.b16 %v649, %v649
  %v656 = vsel %vm160, %v650, 0
  %v659 = vsel %vm160, %v651, 0
  %v662 = vsel %vm160, %v652, 0
  %v665 = vsel %vm160, %v653, 0
  %v668 = vsel %vm160, %v654, 0
  %v671 = vsel %vm414, %v577, 0
  %673 = vmatprep.subr.bf16.mxu0 0
  %674 = vmatpush1.bf16.msra.mxu0 %v671
  %675 = vmatprep.subr.bf16.mxu0 0
  %676 = vmatpush1.bf16.msra.mxu0 0
  %677 = vmatprep.subr.bf16.mxu0 0
  %678 = vmatpush1.bf16.msra.mxu0 0
  %679 = vmatprep.subr.bf16.mxu0 0
  %680 = vmatpush1.bf16.msra.mxu0 0
  %681 = vmatprep.subr.bf16.mxu0 0
  %682 = vmatpush1.bf16.msra.mxu0 0
  %683 = vmatprep.subr.bf16.mxu0 0
  %684 = vmatpush1.bf16.msra.mxu0 0
  %685 = vmatprep.subr.bf16.mxu0 0
  %686 = vmatpush1.bf16.msra.mxu0 0
  %687 = vmatprep.subr.bf16.mxu0 0
  %688 = vmatpush1.bf16.msra.mxu0 0
  %689 = vmatprep.subr.bf16.mxu0 0
  %690 = vmatpush1.bf16.msra.mxu0 0
  %691 = vmatprep.subr.bf16.mxu0 0
  %692 = vmatpush1.bf16.msra.mxu0 0
  %693 = vmatprep.subr.bf16.mxu0 0
  %694 = vmatpush1.bf16.msra.mxu0 0
  %695 = vmatprep.subr.bf16.mxu0 0
  %696 = vmatpush1.bf16.msra.mxu0 0
  %697 = vmatprep.subr.bf16.mxu0 0
  %698 = vmatpush1.bf16.msra.mxu0 0
  %699 = vmatprep.subr.bf16.mxu0 0
  %700 = vmatpush1.bf16.msra.mxu0 0
  %701 = vmatprep.subr.bf16.mxu0 0
  %702 = vmatpush1.bf16.msra.mxu0 0
  %703 = vmatprep.subr.bf16.mxu0 0
  %704 = vmatpush1.bf16.msra.mxu0 0
  %705 = vmatprep.mubr.bf16.mxu0 0
  %706 = vmatmul.mubr.bf16.gmra.mrb[0].mxu0 %v656
  %v707 = vpop.f32.mrb[0].mxu0
  %v708 = vadd.f32 %v590, %v707
  %v709 = vpop.f32.mrb[0].mxu0
  %v710 = vpop.f32.mrb[0].mxu0
  %v711 = vadd.f32 %v595, %v710
  %v712 = vpop.f32.mrb[0].mxu0
  %713 = vmatprep.mubr.bf16.mxu0 0
  %714 = vmatmul.mubr.bf16.gmra.mrb[0].mxu0 %v659
  %v715 = vpop.f32.mrb[0].mxu0
  %v716 = vadd.f32 %v600, %v715
  %v717 = vpop.f32.mrb[0].mxu0
  %v718 = vpop.f32.mrb[0].mxu0
  %v719 = vadd.f32 %v605, %v718
  %v720 = vpop.f32.mrb[0].mxu0
  %721 = vmatprep.mubr.bf16.mxu0 0
  %722 = vmatmul.mubr.bf16.gmra.mrb[0].mxu0 %v662
  %v723 = vpop.f32.mrb[0].mxu0
  %v724 = vadd.f32 %v610, %v723
  %v725 = vpop.f32.mrb[0].mxu0
  %v726 = vpop.f32.mrb[0].mxu0
  %v727 = vadd.f32 %v615, %v726
  %v728 = vpop.f32.mrb[0].mxu0
  %729 = vmatprep.mubr.bf16.mxu0 0
  %730 = vmatmul.mubr.bf16.gmra.mrb[0].mxu0 %v665
  %v731 = vpop.f32.mrb[0].mxu0
  %v732 = vadd.f32 %v620, %v731
  %v733 = vpop.f32.mrb[0].mxu0
  %v734 = vpop.f32.mrb[0].mxu0
  %v735 = vadd.f32 %v625, %v734
  %v736 = vpop.f32.mrb[0].mxu0
  %737 = vmatprep.mubr.bf16.mxu0 0
  %738 = vmatmul.mubr.bf16.gmra.mrb[0].mxu0 %v668
  %v739 = vpop.f32.mrb[0].mxu0
  %v740 = vadd.f32 %v630, %v739
  %v741 = vpop.f32.mrb[0].mxu0
  %v742 = vpop.f32.mrb[0].mxu0
  %v743 = vpop.f32.mrb[0].mxu0
  %744 = vdwg.mxu0
  %753 = vrot.lane.b32.xlu0 %v708, 16
  %v754 = vpop.permute.xlu0 %753
  %755 = vrot.lane.b32.xlu0 %v711, 16
  %v756 = vpop.permute.xlu0 %755
  %757 = vrot.lane.b32.xlu0 %v716, 16
  %v758 = vpop.permute.xlu0 %757
  %759 = vrot.lane.b32.xlu0 %v719, 16
  %v760 = vpop.permute.xlu0 %759
  %761 = vrot.lane.b32.xlu0 %v724, 16
  %v762 = vpop.permute.xlu0 %761
  %763 = vrot.lane.b32.xlu0 %v727, 16
  %v764 = vpop.permute.xlu0 %763
  %765 = vrot.lane.b32.xlu0 %v732, 16
  %v766 = vpop.permute.xlu0 %765
  %767 = vrot.lane.b32.xlu0 %v735, 16
  %v768 = vpop.permute.xlu0 %767
  %v777 = vadd.f32 %v453, %v754
  %v778 = vadd.f32 %v456, %v756
  %v779 = vadd.f32 %v461, %v758
  %v780 = vadd.f32 %v464, %v760
  %v781 = vadd.f32 %v469, %v762
  %v782 = vadd.f32 %v472, %v764
  %v783 = vadd.f32 %v477, %v766
  %v784 = vadd.f32 %v480, %v768
  %v785 = vadd.f32 %v740, %v494
  %v786 = vmul.f32 %v785, 0.999995
  %788 = vrot.lane.b32.xlu0 %v786, 120
  %v789 = vpop.permute.xlu0 %788
  %v791 = vld [vmem:[%s11] sm:$0xf]
  %v792 = vld [vmem:[%s11 + $0x4] sm:$0xf]
  %v793 = vpack.c.bf16 %v789, %v786
  %v794 = vld [vmem:[%s12] sm:$0xff]
  %v795 = vld [vmem:[%s12 + $0x8] sm:$0xff]
  %797 = vset.pattern.permute.xlu0 0
  %798 = vperm.xlu0 %797, %v794
  %v799 = vpop.permute.xlu0 %798
  %802 = vset.pattern.permute.xlu0 0
  %803 = vperm.xlu0 %802, %v795
  %v804 = vpop.permute.xlu0 %803
  %v808 = vunpack.c.l.b16 %v791
  %v809 = vunpack.c.l.b16 %v792
  %v810 = vpack.c.b16 %v809, %v808
  %v812 = vsel %vm164, %v810, 0
  %814 = vmatprep.subr.bf16.mxu0 0
  %815 = vmatpush1.bf16.msra.mxu0 %v793
  %816 = vmatprep.subr.bf16.mxu0 0
  %817 = vmatpush1.bf16.msra.mxu0 0
  %818 = vmatprep.subr.bf16.mxu0 0
  %819 = vmatpush1.bf16.msra.mxu0 0
  %820 = vmatprep.subr.bf16.mxu0 0
  %821 = vmatpush1.bf16.msra.mxu0 0
  %822 = vmatprep.subr.bf16.mxu0 0
  %823 = vmatpush1.bf16.msra.mxu0 0
  %824 = vmatprep.subr.bf16.mxu0 0
  %825 = vmatpush1.bf16.msra.mxu0 0
  %826 = vmatprep.subr.bf16.mxu0 0
  %827 = vmatpush1.bf16.msra.mxu0 0
  %828 = vmatprep.subr.bf16.mxu0 0
  %829 = vmatpush1.bf16.msra.mxu0 0
  %830 = vmatprep.subr.bf16.mxu0 0
  %831 = vmatpush1.bf16.msra.mxu0 0
  %832 = vmatprep.subr.bf16.mxu0 0
  %833 = vmatpush1.bf16.msra.mxu0 0
  %834 = vmatprep.subr.bf16.mxu0 0
  %835 = vmatpush1.bf16.msra.mxu0 0
  %836 = vmatprep.subr.bf16.mxu0 0
  %837 = vmatpush1.bf16.msra.mxu0 0
  %838 = vmatprep.subr.bf16.mxu0 0
  %839 = vmatpush1.bf16.msra.mxu0 0
  %840 = vmatprep.subr.bf16.mxu0 0
  %841 = vmatpush1.bf16.msra.mxu0 0
  %842 = vmatprep.subr.bf16.mxu0 0
  %843 = vmatpush1.bf16.msra.mxu0 0
  %844 = vmatprep.subr.bf16.mxu0 0
  %845 = vmatpush1.bf16.msra.mxu0 0
  %846 = vmatprep.mubr.bf16.mxu0 0
  %847 = vmatmul.mubr.bf16.gmra.mrb[0].mxu0 %v812
  %v848 = vpop.f32.mrb[0].mxu0
  %v849 = vadd.f32 %v799, %v848
  %v850 = vpop.f32.mrb[0].mxu0
  %v851 = vpop.f32.mrb[0].mxu0
  %v852 = vadd.f32 %v804, %v851
  %v853 = vpop.f32.mrb[0].mxu0
  %854 = vdwg.mxu0
  %v855 = vtanh.pop %v849
  %v856 = vxor.u32 %v852, 2147483648
  %v857 = vmul.f32 %v856, 1.442695
  %v858 = vpow.pop %v857
  %v859 = vadd.f32 %v858, 1.0
  %v860 = vrcp.pop %v859
  %v861 = vmul.f32 1.0, %v860
  %v862 = vmul.f32 %v855, %v861
  %v863 = vld [vmem:[%s13] sm:$0xf]
  %v864 = vld [vmem:[%s13 + $0x4] sm:$0xf]
  %v865 = vld [vmem:[%s13 + $0x8] sm:$0xf]
  %v866 = vld [vmem:[%s13 + $0xc] sm:$0xf]
  %v867 = vld [vmem:[%s13 + $0x10] sm:$0xf]
  %v868 = vld [vmem:[%s13 + $0x14] sm:$0xf]
  %v869 = vld [vmem:[%s13 + $0x18] sm:$0xf]
  %v870 = vld [vmem:[%s13 + $0x1c] sm:$0xf]
  %v871 = vld [vmem:[%s13 + $0x20] sm:$0xf]
  %v872 = vpack.c.bf16 %v862, %v862
  %v873 = vld [vmem:[%s14] sm:$0xff]
  %v874 = vld [vmem:[%s14 + $0x8] sm:$0xff]
  %v875 = vld [vmem:[%s14 + $0x10] sm:$0xff]
  %v876 = vld [vmem:[%s14 + $0x18] sm:$0xff]
  %v877 = vld [vmem:[%s14 + $0x20] sm:$0xff]
  %v878 = vld [vmem:[%s14 + $0x28] sm:$0xff]
  %v879 = vld [vmem:[%s14 + $0x30] sm:$0xff]
  %v880 = vld [vmem:[%s14 + $0x38] sm:$0xff]
  %v881 = vld [vmem:[%s14 + $0x40] sm:$0xff]
  %883 = vset.pattern.permute.xlu0 0
  %884 = vperm.xlu0 %883, %v873
  %v885 = vpop.permute.xlu0 %884
  %888 = vset.pattern.permute.xlu0 0
  %889 = vperm.xlu0 %888, %v874
  %v890 = vpop.permute.xlu0 %889
  %893 = vset.pattern.permute.xlu0 0
  %894 = vperm.xlu0 %893, %v875
  %v895 = vpop.permute.xlu0 %894
  %898 = vset.pattern.permute.xlu0 0
  %899 = vperm.xlu0 %898, %v876
  %v900 = vpop.permute.xlu0 %899
  %903 = vset.pattern.permute.xlu0 0
  %904 = vperm.xlu0 %903, %v877
  %v905 = vpop.permute.xlu0 %904
  %908 = vset.pattern.permute.xlu0 0
  %909 = vperm.xlu0 %908, %v878
  %v910 = vpop.permute.xlu0 %909
  %913 = vset.pattern.permute.xlu0 0
  %914 = vperm.xlu0 %913, %v879
  %v915 = vpop.permute.xlu0 %914
  %918 = vset.pattern.permute.xlu0 0
  %919 = vperm.xlu0 %918, %v880
  %v920 = vpop.permute.xlu0 %919
  %923 = vset.pattern.permute.xlu0 0
  %924 = vperm.xlu0 %923, %v881
  %v925 = vpop.permute.xlu0 %924
  %v936 = vunpack.c.l.b16 %v863
  %v937 = vunpack.c.l.b16 %v864
  %v938 = vunpack.c.l.b16 %v865
  %v939 = vunpack.c.l.b16 %v866
  %v940 = vunpack.c.l.b16 %v867
  %v941 = vunpack.c.l.b16 %v868
  %v942 = vunpack.c.l.b16 %v869
  %v943 = vunpack.c.l.b16 %v870
  %v944 = vunpack.c.l.b16 %v871
  %v945 = vpack.c.b16 %v937, %v936
  %v946 = vpack.c.b16 %v939, %v938
  %v947 = vpack.c.b16 %v941, %v940
  %v948 = vpack.c.b16 %v943, %v942
  %v949 = vpack.c.b16 %v944, %v944
  %v951 = vsel %vm160, %v945, 0
  %v954 = vsel %vm160, %v946, 0
  %v957 = vsel %vm160, %v947, 0
  %v960 = vsel %vm160, %v948, 0
  %v963 = vsel %vm160, %v949, 0
  %v966 = vsel %vm414, %v872, 0
  %968 = vmatprep.subr.bf16.mxu0 0
  %969 = vmatpush1.bf16.msra.mxu0 %v966
  %970 = vmatprep.subr.bf16.mxu0 0
  %971 = vmatpush1.bf16.msra.mxu0 0
  %972 = vmatprep.subr.bf16.mxu0 0
  %973 = vmatpush1.bf16.msra.mxu0 0
  %974 = vmatprep.subr.bf16.mxu0 0
  %975 = vmatpush1.bf16.msra.mxu0 0
  %976 = vmatprep.subr.bf16.mxu0 0
  %977 = vmatpush1.bf16.msra.mxu0 0
  %978 = vmatprep.subr.bf16.mxu0 0
  %979 = vmatpush1.bf16.msra.mxu0 0
  %980 = vmatprep.subr.bf16.mxu0 0
  %981 = vmatpush1.bf16.msra.mxu0 0
  %982 = vmatprep.subr.bf16.mxu0 0
  %983 = vmatpush1.bf16.msra.mxu0 0
  %984 = vmatprep.subr.bf16.mxu0 0
  %985 = vmatpush1.bf16.msra.mxu0 0
  %986 = vmatprep.subr.bf16.mxu0 0
  %987 = vmatpush1.bf16.msra.mxu0 0
  %988 = vmatprep.subr.bf16.mxu0 0
  %989 = vmatpush1.bf16.msra.mxu0 0
  %990 = vmatprep.subr.bf16.mxu0 0
  %991 = vmatpush1.bf16.msra.mxu0 0
  %992 = vmatprep.subr.bf16.mxu0 0
  %993 = vmatpush1.bf16.msra.mxu0 0
  %994 = vmatprep.subr.bf16.mxu0 0
  %995 = vmatpush1.bf16.msra.mxu0 0
  %996 = vmatprep.subr.bf16.mxu0 0
  %997 = vmatpush1.bf16.msra.mxu0 0
  %998 = vmatprep.subr.bf16.mxu0 0
  %999 = vmatpush1.bf16.msra.mxu0 0
  %1000 = vmatprep.mubr.bf16.mxu0 0
  %1001 = vmatmul.mubr.bf16.gmra.mrb[0].mxu0 %v951
  %v1002 = vpop.f32.mrb[0].mxu0
  %v1003 = vadd.f32 %v885, %v1002
  %v1004 = vpop.f32.mrb[0].mxu0
  %v1005 = vpop.f32.mrb[0].mxu0
  %v1006 = vadd.f32 %v890, %v1005
  %v1007 = vpop.f32.mrb[0].mxu0
  %1008 = vmatprep.mubr.bf16.mxu0 0
  %1009 = vmatmul.mubr.bf16.gmra.mrb[0].mxu0 %v954
  %v1010 = vpop.f32.mrb[0].mxu0
  %v1011 = vadd.f32 %v895, %v1010
  %v1012 = vpop.f32.mrb[0].mxu0
  %v1013 = vpop.f32.mrb[0].mxu0
  %v1014 = vadd.f32 %v900, %v1013
  %v1015 = vpop.f32.mrb[0].mxu0
  %1016 = vmatprep.mubr.bf16.mxu0 0
  %1017 = vmatmul.mubr.bf16.gmra.mrb[0].mxu0 %v957
  %v1018 = vpop.f32.mrb[0].mxu0
  %v1019 = vadd.f32 %v905, %v1018
  %v1020 = vpop.f32.mrb[0].mxu0
  %v1021 = vpop.f32.mrb[0].mxu0
  %v1022 = vadd.f32 %v910, %v1021
  %v1023 = vpop.f32.mrb[0].mxu0
  %1024 = vmatprep.mubr.bf16.mxu0 0
  %1025 = vmatmul.mubr.bf16.gmra.mrb[0].mxu0 %v960
  %v1026 = vpop.f32.mrb[0].mxu0
  %v1027 = vadd.f32 %v915, %v1026
  %v1028 = vpop.f32.mrb[0].mxu0
  %v1029 = vpop.f32.mrb[0].mxu0
  %v1030 = vadd.f32 %v920, %v1029
  %v1031 = vpop.f32.mrb[0].mxu0
  %1032 = vmatprep.mubr.bf16.mxu0 0
  %1033 = vmatmul.mubr.bf16.gmra.mrb[0].mxu0 %v963
  %v1034 = vpop.f32.mrb[0].mxu0
  %v1035 = vadd.f32 %v925, %v1034
  %v1036 = vpop.f32.mrb[0].mxu0
  %v1037 = vpop.f32.mrb[0].mxu0
  %v1038 = vpop.f32.mrb[0].mxu0
  %1039 = vdwg.mxu0
  %1048 = vrot.lane.b32.xlu0 %v1003, 24
  %v1049 = vpop.permute.xlu0 %1048
  %1050 = vrot.lane.b32.xlu0 %v1006, 24
  %v1051 = vpop.permute.xlu0 %1050
  %1052 = vrot.lane.b32.xlu0 %v1011, 24
  %v1053 = vpop.permute.xlu0 %1052
  %1054 = vrot.lane.b32.xlu0 %v1014, 24
  %v1055 = vpop.permute.xlu0 %1054
  %1056 = vrot.lane.b32.xlu0 %v1019, 24
  %v1057 = vpop.permute.xlu0 %1056
  %1058 = vrot.lane.b32.xlu0 %v1022, 24
  %v1059 = vpop.permute.xlu0 %1058
  %1060 = vrot.lane.b32.xlu0 %v1027, 24
  %v1061 = vpop.permute.xlu0 %1060
  %1062 = vrot.lane.b32.xlu0 %v1030, 24
  %v1063 = vpop.permute.xlu0 %1062
  %v1072 = vadd.f32 %v777, %v1049
  %v1073 = vadd.f32 %v778, %v1051
  %v1074 = vadd.f32 %v779, %v1053
  %v1075 = vadd.f32 %v780, %v1055
  %v1076 = vadd.f32 %v781, %v1057
  %v1077 = vadd.f32 %v782, %v1059
  %v1078 = vadd.f32 %v783, %v1061
  %v1079 = vadd.f32 %v784, %v1063
  %v1080 = vadd.f32 %v1035, %v789
  %v1081 = vmul.f32 %v1080, 0.999995
  %1083 = vrot.lane.b32.xlu0 %v1081, 112
  %v1084 = vpop.permute.xlu0 %1083
  %v1086 = vld [vmem:[%s15] sm:$0xf]
  %v1087 = vld [vmem:[%s15 + $0x4] sm:$0xf]
  %v1088 = vpack.c.bf16 %v1084, %v1081
  %v1089 = vld [vmem:[%s16] sm:$0xff]
  %v1090 = vld [vmem:[%s16 + $0x8] sm:$0xff]
  %1092 = vset.pattern.permute.xlu0 0
  %1093 = vperm.xlu0 %1092, %v1089
  %v1094 = vpop.permute.xlu0 %1093
  %1097 = vset.pattern.permute.xlu0 0
  %1098 = vperm.xlu0 %1097, %v1090
  %v1099 = vpop.permute.xlu0 %1098
  %v1103 = vunpack.c.l.b16 %v1086
  %v1104 = vunpack.c.l.b16 %v1087
  %v1105 = vpack.c.b16 %v1104, %v1103
  %v1107 = vsel %vm164, %v1105, 0
  %1109 = vmatprep.subr.bf16.mxu0 0
  %1110 = vmatpush1.bf16.msra.mxu0 %v1088
  %1111 = vmatprep.subr.bf16.mxu0 0
  %1112 = vmatpush1.bf16.msra.mxu0 0
  %1113 = vmatprep.subr.bf16.mxu0 0
  %1114 = vmatpush1.bf16.msra.mxu0 0
  %1115 = vmatprep.subr.bf16.mxu0 0
  %1116 = vmatpush1.bf16.msra.mxu0 0
  %1117 = vmatprep.subr.bf16.mxu0 0
  %1118 = vmatpush1.bf16.msra.mxu0 0
  %1119 = vmatprep.subr.bf16.mxu0 0
  %1120 = vmatpush1.bf16.msra.mxu0 0
  %1121 = vmatprep.subr.bf16.mxu0 0
  %1122 = vmatpush1.bf16.msra.mxu0 0
  %1123 = vmatprep.subr.bf16.mxu0 0
  %1124 = vmatpush1.bf16.msra.mxu0 0
  %1125 = vmatprep.subr.bf16.mxu0 0
  %1126 = vmatpush1.bf16.msra.mxu0 0
  %1127 = vmatprep.subr.bf16.mxu0 0
  %1128 = vmatpush1.bf16.msra.mxu0 0
  %1129 = vmatprep.subr.bf16.mxu0 0
  %1130 = vmatpush1.bf16.msra.mxu0 0
  %1131 = vmatprep.subr.bf16.mxu0 0
  %1132 = vmatpush1.bf16.msra.mxu0 0
  %1133 = vmatprep.subr.bf16.mxu0 0
  %1134 = vmatpush1.bf16.msra.mxu0 0
  %1135 = vmatprep.subr.bf16.mxu0 0
  %1136 = vmatpush1.bf16.msra.mxu0 0
  %1137 = vmatprep.subr.bf16.mxu0 0
  %1138 = vmatpush1.bf16.msra.mxu0 0
  %1139 = vmatprep.subr.bf16.mxu0 0
  %1140 = vmatpush1.bf16.msra.mxu0 0
  %1141 = vmatprep.mubr.bf16.mxu0 0
  %1142 = vmatmul.mubr.bf16.gmra.mrb[0].mxu0 %v1107
  %v1143 = vpop.f32.mrb[0].mxu0
  %v1144 = vadd.f32 %v1094, %v1143
  %v1145 = vpop.f32.mrb[0].mxu0
  %v1146 = vpop.f32.mrb[0].mxu0
  %v1147 = vadd.f32 %v1099, %v1146
  %v1148 = vpop.f32.mrb[0].mxu0
  %1149 = vdwg.mxu0
  %v1150 = vtanh.pop %v1144
  %v1151 = vxor.u32 %v1147, 2147483648
  %v1152 = vmul.f32 %v1151, 1.442695
  %v1153 = vpow.pop %v1152
  %v1154 = vadd.f32 %v1153, 1.0
  %v1155 = vrcp.pop %v1154
  %v1156 = vmul.f32 1.0, %v1155
  %v1157 = vmul.f32 %v1150, %v1156
  %v1158 = vld [vmem:[%s17] sm:$0xf]
  %v1159 = vld [vmem:[%s17 + $0x4] sm:$0xf]
  %v1160 = vld [vmem:[%s17 + $0x8] sm:$0xf]
  %v1161 = vld [vmem:[%s17 + $0xc] sm:$0xf]
  %v1162 = vld [vmem:[%s17 + $0x10] sm:$0xf]
  %v1163 = vld [vmem:[%s17 + $0x14] sm:$0xf]
  %v1164 = vld [vmem:[%s17 + $0x18] sm:$0xf]
  %v1165 = vld [vmem:[%s17 + $0x1c] sm:$0xf]
  %v1166 = vld [vmem:[%s17 + $0x20] sm:$0xf]
  %v1167 = vpack.c.bf16 %v1157, %v1157
  %v1168 = vld [vmem:[%s18] sm:$0xff]
  %v1169 = vld [vmem:[%s18 + $0x8] sm:$0xff]
  %v1170 = vld [vmem:[%s18 + $0x10] sm:$0xff]
  %v1171 = vld [vmem:[%s18 + $0x18] sm:$0xff]
  %v1172 = vld [vmem:[%s18 + $0x20] sm:$0xff]
  %v1173 = vld [vmem:[%s18 + $0x28] sm:$0xff]
  %v1174 = vld [vmem:[%s18 + $0x30] sm:$0xff]
  %v1175 = vld [vmem:[%s18 + $0x38] sm:$0xff]
  %v1176 = vld [vmem:[%s18 + $0x40] sm:$0xff]
  %1178 = vset.pattern.permute.xlu0 0
  %1179 = vperm.xlu0 %1178, %v1168
  %v1180 = vpop.permute.xlu0 %1179
  %1183 = vset.pattern.permute.xlu0 0
  %1184 = vperm.xlu0 %1183, %v1169
  %v1185 = vpop.permute.xlu0 %1184
  %1188 = vset.pattern.permute.xlu0 0
  %1189 = vperm.xlu0 %1188, %v1170
  %v1190 = vpop.permute.xlu0 %1189
  %1193 = vset.pattern.permute.xlu0 0
  %1194 = vperm.xlu0 %1193, %v1171
  %v1195 = vpop.permute.xlu0 %1194
  %1198 = vset.pattern.permute.xlu0 0
  %1199 = vperm.xlu0 %1198, %v1172
  %v1200 = vpop.permute.xlu0 %1199
  %1203 = vset.pattern.permute.xlu0 0
  %1204 = vperm.xlu0 %1203, %v1173
  %v1205 = vpop.permute.xlu0 %1204
  %1208 = vset.pattern.permute.xlu0 0
  %1209 = vperm.xlu0 %1208, %v1174
  %v1210 = vpop.permute.xlu0 %1209
  %1213 = vset.pattern.permute.xlu0 0
  %1214 = vperm.xlu0 %1213, %v1175
  %v1215 = vpop.permute.xlu0 %1214
  %1218 = vset.pattern.permute.xlu0 0
  %1219 = vperm.xlu0 %1218, %v1176
  %v1220 = vpop.permute.xlu0 %1219
  %v1230 = vunpack.c.l.b16 %v1158
  %v1231 = vunpack.c.l.b16 %v1159
  %v1232 = vunpack.c.l.b16 %v1160
  %v1233 = vunpack.c.l.b16 %v1161
  %v1234 = vunpack.c.l.b16 %v1162
  %v1235 = vunpack.c.l.b16 %v1163
  %v1236 = vunpack.c.l.b16 %v1164
  %v1237 = vunpack.c.l.b16 %v1165
  %v1238 = vunpack.c.l.b16 %v1166
  %v1239 = vpack.c.b16 %v1231, %v1230
  %v1240 = vpack.c.b16 %v1233, %v1232
  %v1241 = vpack.c.b16 %v1235, %v1234
  %v1242 = vpack.c.b16 %v1237, %v1236
  %v1243 = vpack.c.b16 %v1238, %v1238
  %v1245 = vsel %vm160, %v1239, 0
  %v1248 = vsel %vm160, %v1240, 0
  %v1251 = vsel %vm160, %v1241, 0
  %v1254 = vsel %vm160, %v1242, 0
  %v1257 = vsel %vm160, %v1243, 0
  %v1260 = vsel %vm414, %v1167, 0
  %1262 = vmatprep.subr.bf16.mxu0 0
  %1263 = vmatpush1.bf16.msra.mxu0 %v1260
  %1264 = vmatprep.subr.bf16.mxu0 0
  %1265 = vmatpush1.bf16.msra.mxu0 0
  %1266 = vmatprep.subr.bf16.mxu0 0
  %1267 = vmatpush1.bf16.msra.mxu0 0
  %1268 = vmatprep.subr.bf16.mxu0 0
  %1269 = vmatpush1.bf16.msra.mxu0 0
  %1270 = vmatprep.subr.bf16.mxu0 0
  %1271 = vmatpush1.bf16.msra.mxu0 0
  %1272 = vmatprep.subr.bf16.mxu0 0
  %1273 = vmatpush1.bf16.msra.mxu0 0
  %1274 = vmatprep.subr.bf16.mxu0 0
  %1275 = vmatpush1.bf16.msra.mxu0 0
  %1276 = vmatprep.subr.bf16.mxu0 0
  %1277 = vmatpush1.bf16.msra.mxu0 0
  %1278 = vmatprep.subr.bf16.mxu0 0
  %1279 = vmatpush1.bf16.msra.mxu0 0
  %1280 = vmatprep.subr.bf16.mxu0 0
  %1281 = vmatpush1.bf16.msra.mxu0 0
  %1282 = vmatprep.subr.bf16.mxu0 0
  %1283 = vmatpush1.bf16.msra.mxu0 0
  %1284 = vmatprep.subr.bf16.mxu0 0
  %1285 = vmatpush1.bf16.msra.mxu0 0
  %1286 = vmatprep.subr.bf16.mxu0 0
  %1287 = vmatpush1.bf16.msra.mxu0 0
  %1288 = vmatprep.subr.bf16.mxu0 0
  %1289 = vmatpush1.bf16.msra.mxu0 0
  %1290 = vmatprep.subr.bf16.mxu0 0
  %1291 = vmatpush1.bf16.msra.mxu0 0
  %1292 = vmatprep.subr.bf16.mxu0 0
  %1293 = vmatpush1.bf16.msra.mxu0 0
  %1294 = vmatprep.mubr.bf16.mxu0 0
  %1295 = vmatmul.mubr.bf16.gmra.mrb[0].mxu0 %v1245
  %v1296 = vpop.f32.mrb[0].mxu0
  %v1297 = vadd.f32 %v1180, %v1296
  %v1298 = vpop.f32.mrb[0].mxu0
  %v1299 = vpop.f32.mrb[0].mxu0
  %v1300 = vadd.f32 %v1185, %v1299
  %v1301 = vpop.f32.mrb[0].mxu0
  %1302 = vmatprep.mubr.bf16.mxu0 0
  %1303 = vmatmul.mubr.bf16.gmra.mrb[0].mxu0 %v1248
  %v1304 = vpop.f32.mrb[0].mxu0
  %v1305 = vadd.f32 %v1190, %v1304
  %v1306 = vpop.f32.mrb[0].mxu0
  %v1307 = vpop.f32.mrb[0].mxu0
  %v1308 = vadd.f32 %v1195, %v1307
  %v1309 = vpop.f32.mrb[0].mxu0
  %1310 = vmatprep.mubr.bf16.mxu0 0
  %1311 = vmatmul.mubr.bf16.gmra.mrb[0].mxu0 %v1251
  %v1312 = vpop.f32.mrb[0].mxu0
  %v1313 = vadd.f32 %v1200, %v1312
  %v1314 = vpop.f32.mrb[0].mxu0
  %v1315 = vpop.f32.mrb[0].mxu0
  %v1316 = vadd.f32 %v1205, %v1315
  %v1317 = vpop.f32.mrb[0].mxu0
  %1318 = vmatprep.mubr.bf16.mxu0 0
  %1319 = vmatmul.mubr.bf16.gmra.mrb[0].mxu0 %v1254
  %v1320 = vpop.f32.mrb[0].mxu0
  %v1321 = vadd.f32 %v1210, %v1320
  %v1322 = vpop.f32.mrb[0].mxu0
  %v1323 = vpop.f32.mrb[0].mxu0
  %v1324 = vadd.f32 %v1215, %v1323
  %v1325 = vpop.f32.mrb[0].mxu0
  %1326 = vmatprep.mubr.bf16.mxu0 0
  %1327 = vmatmul.mubr.bf16.gmra.mrb[0].mxu0 %v1257
  %v1328 = vpop.f32.mrb[0].mxu0
  %v1329 = vpop.f32.mrb[0].mxu0
  %v1330 = vpop.f32.mrb[0].mxu0
  %v1331 = vpop.f32.mrb[0].mxu0
  %1332 = vdwg.mxu0
  %1341 = vrot.lane.b32.xlu0 %v1297, 40
  %v1342 = vpop.permute.xlu0 %1341
  %1343 = vrot.lane.b32.xlu0 %v1300, 40
  %v1344 = vpop.permute.xlu0 %1343
  %1345 = vrot.lane.b32.xlu0 %v1305, 40
  %v1346 = vpop.permute.xlu0 %1345
  %1347 = vrot.lane.b32.xlu0 %v1308, 40
  %v1348 = vpop.permute.xlu0 %1347
  %1349 = vrot.lane.b32.xlu0 %v1313, 40
  %v1350 = vpop.permute.xlu0 %1349
  %1351 = vrot.lane.b32.xlu0 %v1316, 40
  %v1352 = vpop.permute.xlu0 %1351
  %1353 = vrot.lane.b32.xlu0 %v1321, 40
  %v1354 = vpop.permute.xlu0 %1353
  %1355 = vrot.lane.b32.xlu0 %v1324, 40
  %v1356 = vpop.permute.xlu0 %1355
  %v1365 = vadd.f32 %v1072, %v1342
  %v1366 = vadd.f32 %v1073, %v1344
  %v1367 = vadd.f32 %v1074, %v1346
  %v1368 = vadd.f32 %v1075, %v1348
  %v1369 = vadd.f32 %v1076, %v1350
  %v1370 = vadd.f32 %v1077, %v1352
  %v1371 = vadd.f32 %v1078, %v1354
  %v1372 = vadd.f32 %v1079, %v1356
  %v1373 = vmax.f32 %v1365, 0.0
  %v1374 = vmax.f32 %v1366, 0.0
  %v1375 = vmax.f32 %v1367, 0.0
  %v1376 = vmax.f32 %v1368, 0.0
  %v1377 = vmax.f32 %v1369, 0.0
  %v1378 = vmax.f32 %v1370, 0.0
  %v1379 = vmax.f32 %v1371, 0.0
  %v1380 = vmax.f32 %v1372, 0.0
  %v1381 = vld [vmem:[%s19] sm:$0xf]
  %v1382 = vld [vmem:[%s19 + $0x4] sm:$0xf]
  %v1383 = vld [vmem:[%s19 + $0x8] sm:$0xf]
  %v1384 = vld [vmem:[%s19 + $0xc] sm:$0xf]
  %v1385 = vld [vmem:[%s19 + $0x10] sm:$0xf]
  %v1386 = vld [vmem:[%s19 + $0x14] sm:$0xf]
  %v1387 = vld [vmem:[%s19 + $0x18] sm:$0xf]
  %v1388 = vld [vmem:[%s19 + $0x1c] sm:$0xf]
  %v1389 = vld [vmem:[%s19 + $0x20] sm:$0xf]
  %v1390 = vld [vmem:[%s19 + $0x24] sm:$0xf]
  %v1391 = vld [vmem:[%s19 + $0x28] sm:$0xf]
  %v1392 = vld [vmem:[%s19 + $0x2c] sm:$0xf]
  %v1393 = vld [vmem:[%s19 + $0x30] sm:$0xf]
  %v1394 = vld [vmem:[%s19 + $0x34] sm:$0xf]
  %v1395 = vld [vmem:[%s19 + $0x38] sm:$0xf]
  %v1396 = vld [vmem:[%s19 + $0x3c] sm:$0xf]
  %v1397 = vpack.c.bf16 %v1374, %v1373
  %v1398 = vpack.c.bf16 %v1376, %v1375
  %v1399 = vpack.c.bf16 %v1378, %v1377
  %v1400 = vpack.c.bf16 %v1380, %v1379
  %v1401 = vld [vmem:[%s20] sm:$0xff]
  %v1402 = vld [vmem:[%s20 + $0x8] sm:$0xff]
  %v1403 = vld [vmem:[%s20 + $0x10] sm:$0xff]
  %v1404 = vld [vmem:[%s20 + $0x18] sm:$0xff]
  %v1405 = vld [vmem:[%s20 + $0x20] sm:$0xff]
  %v1406 = vld [vmem:[%s20 + $0x28] sm:$0xff]
  %v1407 = vld [vmem:[%s20 + $0x30] sm:$0xff]
  %v1408 = vld [vmem:[%s20 + $0x38] sm:$0xff]
  %v1409 = vld [vmem:[%s20 + $0x40] sm:$0xff]
  %v1410 = vld [vmem:[%s20 + $0x48] sm:$0xff]
  %v1411 = vld [vmem:[%s20 + $0x50] sm:$0xff]
  %v1412 = vld [vmem:[%s20 + $0x58] sm:$0xff]
  %v1413 = vld [vmem:[%s20 + $0x60] sm:$0xff]
  %v1414 = vld [vmem:[%s20 + $0x68] sm:$0xff]
  %v1415 = vld [vmem:[%s20 + $0x70] sm:$0xff]
  %v1416 = vld [vmem:[%s20 + $0x78] sm:$0xff]
  %1418 = vset.pattern.permute.xlu0 0
  %1419 = vperm.xlu0 %1418, %v1401
  %v1420 = vpop.permute.xlu0 %1419
  %1423 = vset.pattern.permute.xlu0 0
  %1424 = vperm.xlu0 %1423, %v1402
  %v1425 = vpop.permute.xlu0 %1424
  %1428 = vset.pattern.permute.xlu0 0
  %1429 = vperm.xlu0 %1428, %v1403
  %v1430 = vpop.permute.xlu0 %1429
  %1433 = vset.pattern.permute.xlu0 0
  %1434 = vperm.xlu0 %1433, %v1404
  %v1435 = vpop.permute.xlu0 %1434
  %1438 = vset.pattern.permute.xlu0 0
  %1439 = vperm.xlu0 %1438, %v1405
  %v1440 = vpop.permute.xlu0 %1439
  %1443 = vset.pattern.permute.xlu0 0
  %1444 = vperm.xlu0 %1443, %v1406
  %v1445 = vpop.permute.xlu0 %1444
  %1448 = vset.pattern.permute.xlu0 0
  %1449 = vperm.xlu0 %1448, %v1407
  %v1450 = vpop.permute.xlu0 %1449
  %1453 = vset.pattern.permute.xlu0 0
  %1454 = vperm.xlu0 %1453, %v1408
  %v1455 = vpop.permute.xlu0 %1454
  %1458 = vset.pattern.permute.xlu0 0
  %1459 = vperm.xlu0 %1458, %v1409
  %v1460 = vpop.permute.xlu0 %1459
  %1463 = vset.pattern.permute.xlu0 0
  %1464 = vperm.xlu0 %1463, %v1410
  %v1465 = vpop.permute.xlu0 %1464
  %1468 = vset.pattern.permute.xlu0 0
  %1469 = vperm.xlu0 %1468, %v1411
  %v1470 = vpop.permute.xlu0 %1469
  %1473 = vset.pattern.permute.xlu0 0
  %1474 = vperm.xlu0 %1473, %v1412
  %v1475 = vpop.permute.xlu0 %1474
  %1478 = vset.pattern.permute.xlu0 0
  %1479 = vperm.xlu0 %1478, %v1413
  %v1480 = vpop.permute.xlu0 %1479
  %1483 = vset.pattern.permute.xlu0 0
  %1484 = vperm.xlu0 %1483, %v1414
  %v1485 = vpop.permute.xlu0 %1484
  %1488 = vset.pattern.permute.xlu0 0
  %1489 = vperm.xlu0 %1488, %v1415
  %v1490 = vpop.permute.xlu0 %1489
  %1493 = vset.pattern.permute.xlu0 0
  %1494 = vperm.xlu0 %1493, %v1416
  %v1495 = vpop.permute.xlu0 %1494
  %v1513 = vunpack.c.l.b16 %v1381
  %v1514 = vunpack.c.l.b16 %v1382
  %v1515 = vunpack.c.l.b16 %v1383
  %v1516 = vunpack.c.l.b16 %v1384
  %v1517 = vunpack.c.l.b16 %v1385
  %v1518 = vunpack.c.l.b16 %v1386
  %v1519 = vunpack.c.l.b16 %v1387
  %v1520 = vunpack.c.l.b16 %v1388
  %v1521 = vunpack.c.l.b16 %v1389
  %v1522 = vunpack.c.l.b16 %v1390
  %v1523 = vunpack.c.l.b16 %v1391
  %v1524 = vunpack.c.l.b16 %v1392
  %v1525 = vunpack.c.l.b16 %v1393
  %v1526 = vunpack.c.l.b16 %v1394
  %v1527 = vunpack.c.l.b16 %v1395
  %v1528 = vunpack.c.l.b16 %v1396
  %v1529 = vpack.c.b16 %v1514, %v1513
  %v1530 = vpack.c.b16 %v1516, %v1515
  %v1531 = vpack.c.b16 %v1518, %v1517
  %v1532 = vpack.c.b16 %v1520, %v1519
  %v1533 = vpack.c.b16 %v1522, %v1521
  %v1534 = vpack.c.b16 %v1524, %v1523
  %v1535 = vpack.c.b16 %v1526, %v1525
  %v1536 = vpack.c.b16 %v1528, %v1527
  %1541 = vrot.lane.b32.xlu0 %v1397, 88
  %v1542 = vpop.permute.xlu0 %1541
  %1543 = vrot.lane.b32.xlu0 %v1398, 88
  %v1544 = vpop.permute.xlu0 %1543
  %1545 = vrot.lane.b32.xlu0 %v1399, 88
  %v1546 = vpop.permute.xlu0 %1545
  %1547 = vrot.lane.b32.xlu0 %v1400, 88
  %v1548 = vpop.permute.xlu0 %1547
  %vm1553 = vcmask 523264
  %v1555 = vsel %vm1553, %v1529, 0
  %v1558 = vsel %vm1553, %v1530, 0
  %v1561 = vsel %vm1553, %v1531, 0
  %v1564 = vsel %vm1553, %v1532, 0
  %v1567 = vsel %vm1553, %v1533, 0
  %v1570 = vsel %vm1553, %v1534, 0
  %v1573 = vsel %vm1553, %v1535, 0
  %v1576 = vsel %vm1553, %v1536, 0
  %1578 = vmatprep.subr.bf16.mxu0 0
  %1579 = vmatpush1.bf16.msra.mxu0 %v1542
  %1580 = vmatprep.subr.bf16.mxu0 0
  %1581 = vmatpush1.bf16.msra.mxu0 %v1544
  %1582 = vmatprep.subr.bf16.mxu0 0
  %1583 = vmatpush1.bf16.msra.mxu0 %v1546
  %1584 = vmatprep.subr.bf16.mxu0 0
  %1585 = vmatpush1.bf16.msra.mxu0 %v1548
  %1586 = vmatprep.subr.bf16.mxu0 0
  %1587 = vmatpush1.bf16.msra.mxu0 0
  %1588 = vmatprep.subr.bf16.mxu0 0
  %1589 = vmatpush1.bf16.msra.mxu0 0
  %1590 = vmatprep.subr.bf16.mxu0 0
  %1591 = vmatpush1.bf16.msra.mxu0 0
  %1592 = vmatprep.subr.bf16.mxu0 0
  %1593 = vmatpush1.bf16.msra.mxu0 0
  %1594 = vmatprep.subr.bf16.mxu0 0
  %1595 = vmatpush1.bf16.msra.mxu0 0
  %1596 = vmatprep.subr.bf16.mxu0 0
  %1597 = vmatpush1.bf16.msra.mxu0 0
  %1598 = vmatprep.subr.bf16.mxu0 0
  %1599 = vmatpush1.bf16.msra.mxu0 0
  %1600 = vmatprep.subr.bf16.mxu0 0
  %1601 = vmatpush1.bf16.msra.mxu0 0
  %1602 = vmatprep.subr.bf16.mxu0 0
  %1603 = vmatpush1.bf16.msra.mxu0 0
  %1604 = vmatprep.subr.bf16.mxu0 0
  %1605 = vmatpush1.bf16.msra.mxu0 0
  %1606 = vmatprep.subr.bf16.mxu0 0
  %1607 = vmatpush1.bf16.msra.mxu0 0
  %1608 = vmatprep.subr.bf16.mxu0 0
  %1609 = vmatpush1.bf16.msra.mxu0 0
  %1610 = vmatprep.mubr.bf16.mxu0 0
  %1611 = vmatmul.mubr.bf16.gmra.mrb[0].mxu0 %v1555
  %v1612 = vpop.f32.mrb[0].mxu0
  %v1613 = vadd.f32 %v1420, %v1612
  %v1614 = vpop.f32.mrb[0].mxu0
  %v1615 = vpop.f32.mrb[0].mxu0
  %v1616 = vadd.f32 %v1425, %v1615
  %v1617 = vpop.f32.mrb[0].mxu0
  %1618 = vmatprep.mubr.bf16.mxu0 0
  %1619 = vmatmul.mubr.bf16.gmra.mrb[0].mxu0 %v1558
  %v1620 = vpop.f32.mrb[0].mxu0
  %v1621 = vadd.f32 %v1430, %v1620
  %v1622 = vpop.f32.mrb[0].mxu0
  %v1623 = vpop.f32.mrb[0].mxu0
  %v1624 = vadd.f32 %v1435, %v1623
  %v1625 = vpop.f32.mrb[0].mxu0
  %1626 = vmatprep.mubr.bf16.mxu0 0
  %1627 = vmatmul.mubr.bf16.gmra.mrb[0].mxu0 %v1561
  %v1628 = vpop.f32.mrb[0].mxu0
  %v1629 = vadd.f32 %v1440, %v1628
  %v1630 = vpop.f32.mrb[0].mxu0
  %v1631 = vpop.f32.mrb[0].mxu0
  %v1632 = vadd.f32 %v1445, %v1631
  %v1633 = vpop.f32.mrb[0].mxu0
  %1634 = vmatprep.mubr.bf16.mxu0 0
  %1635 = vmatmul.mubr.bf16.gmra.mrb[0].mxu0 %v1564
  %v1636 = vpop.f32.mrb[0].mxu0
  %v1637 = vadd.f32 %v1450, %v1636
  %v1638 = vpop.f32.mrb[0].mxu0
  %v1639 = vpop.f32.mrb[0].mxu0
  %v1640 = vadd.f32 %v1455, %v1639
  %v1641 = vpop.f32.mrb[0].mxu0
  %1642 = vmatprep.mubr.bf16.mxu0 0
  %1643 = vmatmul.mubr.bf16.gmra.mrb[0].mxu0 %v1567
  %v1644 = vpop.f32.mrb[0].mxu0
  %v1645 = vadd.f32 %v1460, %v1644
  %v1646 = vpop.f32.mrb[0].mxu0
  %v1647 = vpop.f32.mrb[0].mxu0
  %v1648 = vadd.f32 %v1465, %v1647
  %v1649 = vpop.f32.mrb[0].mxu0
  %1650 = vmatprep.mubr.bf16.mxu0 0
  %1651 = vmatmul.mubr.bf16.gmra.mrb[0].mxu0 %v1570
  %v1652 = vpop.f32.mrb[0].mxu0
  %v1653 = vadd.f32 %v1470, %v1652
  %v1654 = vpop.f32.mrb[0].mxu0
  %v1655 = vpop.f32.mrb[0].mxu0
  %v1656 = vadd.f32 %v1475, %v1655
  %v1657 = vpop.f32.mrb[0].mxu0
  %1658 = vmatprep.mubr.bf16.mxu0 0
  %1659 = vmatmul.mubr.bf16.gmra.mrb[0].mxu0 %v1573
  %v1660 = vpop.f32.mrb[0].mxu0
  %v1661 = vadd.f32 %v1480, %v1660
  %v1662 = vpop.f32.mrb[0].mxu0
  %v1663 = vpop.f32.mrb[0].mxu0
  %v1664 = vadd.f32 %v1485, %v1663
  %v1665 = vpop.f32.mrb[0].mxu0
  %1666 = vmatprep.mubr.bf16.mxu0 0
  %1667 = vmatmul.mubr.bf16.gmra.mrb[0].mxu0 %v1576
  %v1668 = vpop.f32.mrb[0].mxu0
  %v1669 = vadd.f32 %v1490, %v1668
  %v1670 = vpop.f32.mrb[0].mxu0
  %v1671 = vpop.f32.mrb[0].mxu0
  %v1672 = vadd.f32 %v1495, %v1671
  %v1673 = vpop.f32.mrb[0].mxu0
  %1674 = vdwg.mxu0
  %v1675 = vmax.f32 %v1613, 0.0
  %v1676 = vmax.f32 %v1616, 0.0
  %v1677 = vmax.f32 %v1621, 0.0
  %v1678 = vmax.f32 %v1624, 0.0
  %v1679 = vmax.f32 %v1629, 0.0
  %v1680 = vmax.f32 %v1632, 0.0
  %v1681 = vmax.f32 %v1637, 0.0
  %v1682 = vmax.f32 %v1640, 0.0
  %v1683 = vmax.f32 %v1645, 0.0
  %v1684 = vmax.f32 %v1648, 0.0
  %v1685 = vmax.f32 %v1653, 0.0
  %v1686 = vmax.f32 %v1656, 0.0
  %v1687 = vmax.f32 %v1661, 0.0
  %v1688 = vmax.f32 %v1664, 0.0
  %v1689 = vmax.f32 %v1669, 0.0
  %v1690 = vmax.f32 %v1672, 0.0
  %v1691 = vld [vmem:[%s21] sm:$0xf]
  %v1692 = vpack.c.bf16 %v1676, %v1675
  %v1693 = vpack.c.bf16 %v1678, %v1677
  %v1694 = vpack.c.bf16 %v1680, %v1679
  %v1695 = vpack.c.bf16 %v1682, %v1681
  %v1696 = vpack.c.bf16 %v1684, %v1683
  %v1697 = vpack.c.bf16 %v1686, %v1685
  %v1698 = vpack.c.bf16 %v1688, %v1687
  %v1699 = vpack.c.bf16 %v1690, %v1689
  %v1700 = vld [vmem:[%s22] sm:$0xff]
  %1702 = vset.pattern.permute.xlu0 0
  %1703 = vperm.xlu0 %1702, %v1700
  %v1704 = vpop.permute.xlu0 %1703
  %1706 = vmatprep.subr.bf16.mxu0 0
  %1707 = vmatpush1.bf16.msra.mxu0 %v1692
  %1708 = vmatprep.subr.bf16.mxu0 0
  %1709 = vmatpush1.bf16.msra.mxu0 %v1693
  %1710 = vmatprep.subr.bf16.mxu0 0
  %1711 = vmatpush1.bf16.msra.mxu0 %v1694
  %1712 = vmatprep.subr.bf16.mxu0 0
  %1713 = vmatpush1.bf16.msra.mxu0 %v1695
  %1714 = vmatprep.subr.bf16.mxu0 0
  %1715 = vmatpush1.bf16.msra.mxu0 %v1696
  %1716 = vmatprep.subr.bf16.mxu0 0
  %1717 = vmatpush1.bf16.msra.mxu0 %v1697
  %1718 = vmatprep.subr.bf16.mxu0 0
  %1719 = vmatpush1.bf16.msra.mxu0 %v1698
  %1720 = vmatprep.subr.bf16.mxu0 0
  %1721 = vmatpush1.bf16.msra.mxu0 %v1699
  %1722 = vmatprep.subr.bf16.mxu0 0
  %1723 = vmatpush1.bf16.msra.mxu0 0
  %1724 = vmatprep.subr.bf16.mxu0 0
  %1725 = vmatpush1.bf16.msra.mxu0 0
  %1726 = vmatprep.subr.bf16.mxu0 0
  %1727 = vmatpush1.bf16.msra.mxu0 0
  %1728 = vmatprep.subr.bf16.mxu0 0
  %1729 = vmatpush1.bf16.msra.mxu0 0
  %1730 = vmatprep.subr.bf16.mxu0 0
  %1731 = vmatpush1.bf16.msra.mxu0 0
  %1732 = vmatprep.subr.bf16.mxu0 0
  %1733 = vmatpush1.bf16.msra.mxu0 0
  %1734 = vmatprep.subr.bf16.mxu0 0
  %1735 = vmatpush1.bf16.msra.mxu0 0
  %1736 = vmatprep.subr.bf16.mxu0 0
  %1737 = vmatpush1.bf16.msra.mxu0 0
  %1738 = vmatprep.mubr.bf16.mxu0 0
  %1739 = vmatmul.mubr.bf16.gmra.mrb[0].mxu0 %v1691
  %v1740 = vpop.f32.mrb[0].mxu0
  %v1741 = vadd.f32 %v1704, %v1740
  %v1742 = vpop.f32.mrb[0].mxu0
  %v1743 = vpop.f32.mrb[0].mxu0
  %v1744 = vpop.f32.mrb[0].mxu0
  %1745 = vdwg.mxu0
  %v1747 = vcombine.high %v1741, %v1741
  %v1749 = vunpack.c.l.s4 1966171168
  %v1750 = vunpack.c.0.s8 %v1749
  %v1751 = vlaneseq
  %v1752 = vshrl.u32 %v1751, 7
  %v1753 = vsub.s32 %v1750, %v1752
  %v1754 = vrot.slane %v1741, %v1753
  %v1756 = vunpack.c.l.s4 1966171168
  %v1757 = vunpack.c.0.s8 %v1756
  %v1758 = vlaneseq
  %v1759 = vshrl.u32 %v1758, 7
  %v1760 = vsub.s32 %v1757, %v1759
  %v1761 = vrot.slane %v1747, %v1760
  %v1762 = vcombine.high %v1754, %v1754
  %v1763 = vcombine.high %v1761, %v1761
  %v1765 = vunpack.c.l.s4 1966171168
  %v1766 = vunpack.c.0.s8 %v1765
  %v1767 = vlaneseq
  %v1768 = vshrl.u32 %v1767, 7
  %v1769 = vsub.s32 %v1766, %v1768
  %v1770 = vrot.slane %v1754, %v1769
  %v1772 = vunpack.c.l.s4 1966171168
  %v1773 = vunpack.c.0.s8 %v1772
  %v1774 = vlaneseq
  %v1775 = vshrl.u32 %v1774, 7
  %v1776 = vsub.s32 %v1773, %v1775
  %v1777 = vrot.slane %v1761, %v1776
  %v1779 = vunpack.c.l.s4 1966171168
  %v1780 = vunpack.c.0.s8 %v1779
  %v1781 = vlaneseq
  %v1782 = vshrl.u32 %v1781, 7
  %v1783 = vsub.s32 %v1780, %v1782
  %v1784 = vrot.slane %v1762, %v1783
  %v1786 = vunpack.c.l.s4 1966171168
  %v1787 = vunpack.c.0.s8 %v1786
  %v1788 = vlaneseq
  %v1789 = vshrl.u32 %v1788, 7
  %v1790 = vsub.s32 %v1787, %v1789
  %v1791 = vrot.slane %v1763, %v1790
  %v1792 = vcombine.high %v1770, %v1770
  %v1793 = vcombine.high %v1777, %v1777
  %v1794 = vcombine.high %v1784, %v1784
  %v1795 = vcombine.high %v1791, %v1791
  %vm1804 = vcmask 57344
  %1805 = vst.msk [vmem:[%s23] sm:$0x1] %vm1804, %v1770
  %1806 = vst.msk [vmem:[%s23 + $0x2] sm:$0x1] %vm1804, %v1784
  %1807 = vst.msk [vmem:[%s23 + $0x4] sm:$0x1] %vm1804, %v1792
  %1808 = vst.msk [vmem:[%s23 + $0x6] sm:$0x1] %vm1804, %v1794
  %1809 = vst.msk [vmem:[%s23 + $0x8] sm:$0x1] %vm1804, %v1777
  %1810 = vst.msk [vmem:[%s23 + $0xa] sm:$0x1] %vm1804, %v1791
  %1811 = vst.msk [vmem:[%s23 + $0xc] sm:$0x1] %vm1804, %v1793
  %1812 = vst.msk [vmem:[%s23 + $0xe] sm:$0x1] %vm1804, %v1795
  %v1813 = vlaneseq
  %v1814 = vshrl.u32 %v1813, 7
  %v1815 = vsub.s32 0, %v1814
  %v1816 = vrot.slane %v1770, %v1815
  %v1817 = vlaneseq
  %v1818 = vshrl.u32 %v1817, 7
  %v1819 = vsub.s32 0, %v1818
  %v1820 = vrot.slane %v1784, %v1819
  %v1821 = vlaneseq
  %v1822 = vshrl.u32 %v1821, 7
  %v1823 = vsub.s32 0, %v1822
  %v1824 = vrot.slane %v1792, %v1823
  %v1825 = vlaneseq
  %v1826 = vshrl.u32 %v1825, 7
  %v1827 = vsub.s32 0, %v1826
  %v1828 = vrot.slane %v1794, %v1827
  %v1829 = vlaneseq
  %v1830 = vshrl.u32 %v1829, 7
  %v1831 = vsub.s32 0, %v1830
  %v1832 = vrot.slane %v1777, %v1831
  %v1833 = vlaneseq
  %v1834 = vshrl.u32 %v1833, 7
  %v1835 = vsub.s32 0, %v1834
  %v1836 = vrot.slane %v1791, %v1835
  %v1837 = vlaneseq
  %v1838 = vshrl.u32 %v1837, 7
  %v1839 = vsub.s32 0, %v1838
  %v1840 = vrot.slane %v1793, %v1839
  %v1841 = vlaneseq
  %v1842 = vshrl.u32 %v1841, 7
  %v1843 = vsub.s32 0, %v1842
  %v1844 = vrot.slane %v1795, %v1843
  %1845 = vrot.lane.b32.xlu0 %v1816, 120
  %v1846 = vpop.permute.xlu0 %1845
  %1847 = vrot.lane.b32.xlu0 %v1820, 120
  %v1848 = vpop.permute.xlu0 %1847
  %1849 = vrot.lane.b32.xlu0 %v1824, 120
  %v1850 = vpop.permute.xlu0 %1849
  %1851 = vrot.lane.b32.xlu0 %v1828, 120
  %v1852 = vpop.permute.xlu0 %1851
  %1853 = vrot.lane.b32.xlu0 %v1832, 120
  %v1854 = vpop.permute.xlu0 %1853
  %1855 = vrot.lane.b32.xlu0 %v1836, 120
  %v1856 = vpop.permute.xlu0 %1855
  %1857 = vrot.lane.b32.xlu0 %v1840, 120
  %v1858 = vpop.permute.xlu0 %1857
  %1859 = vrot.lane.b32.xlu0 %v1844, 120
  %v1860 = vpop.permute.xlu0 %1859
  %1869 = vst.msk [vmem:[%s23 + $0x1] sm:$0x1] %vm1804, %v1846
  %1870 = vst.msk [vmem:[%s23 + $0x3] sm:$0x1] %vm1804, %v1848
  %1871 = vst.msk [vmem:[%s23 + $0x5] sm:$0x1] %vm1804, %v1850
  %1872 = vst.msk [vmem:[%s23 + $0x7] sm:$0x1] %vm1804, %v1852
  %1873 = vst.msk [vmem:[%s23 + $0x9] sm:$0x1] %vm1804, %v1854
  %1874 = vst.msk [vmem:[%s23 + $0xb] sm:$0x1] %vm1804, %v1856
  %1875 = vst.msk [vmem:[%s23 + $0xd] sm:$0x1] %vm1804, %v1858
  %1876 = vst.msk [vmem:[%s23 + $0xf] sm:$0x1] %vm1804, %v1860
  // Predicated region
  $region94: #{block_forward.1} parent=0 // pred_check
    _
  $region95: #{block_forward.1} parent=0 // pred_check_branch
    %1878 = sbr.rel (0) target = $region97
  $region96: #{block_forward.1} parent=0 // pred_region
    _
  $region97: #{block_forward.1} parent=0 // pred_fallthru
    _
  // Predicated region
  $region98: #{block_forward.1} parent=0 // pred_check
    _
  $region99: #{block_forward.1} parent=0 // pred_check_branch
    %1880 = sbr.rel (0) target = $region101
  $region100: #{block_forward.1} parent=0 // pred_region
    _
  $region101: #{block_forward.1} parent=0 // pred_fallthru
    _

</llo_original>
